<compile_context>
chip_gen: v5e
topology: v5e:2x2
jax: 0.10.0
libtpu: 0.0.40
codegen_flags: <defaults>
</compile_context>

<pallas_src>
import jax
import jax.numpy as jnp
from jax.experimental import pallas as pl
from jax.experimental.pallas import tpu as pltpu


def drop_edge(edge_index, dp: float = 0.0):
    """DropEdge.forward: dp == 0 is the identity (module default / eval)."""
    if dp == 0:
        return edge_index
    # TODO(synk): dp > 0 filters edges with a random mask, giving a
    # data-dependent output shape; dynamic shapes are not expressible in
    # JAX/Pallas. A TPU-compatible training-mode variant would keep the shape
    # and zero out dropped edges' contribution instead.
    raise NotImplementedError("DropEdge with dp > 0 needs dynamic shapes")


def _tensorcores_per_chip() -> int:
    """2 on v7x (2 TCs/chip), 1 on v5e/v6e."""
    try:
        kind = jax.devices()[0].device_kind.lower()
    except Exception:
        return 1
    return 2 if "v7" in kind else 1


def _mlp(xijT, w1_ref, b1_ref, w23_ref, b23_ref, w4_ref, b4_ref, out_ref):
    """Folded 2-layer MLP on a transposed [C, te] tile (features on sublanes)."""
    dot_dtype = w1_ref.dtype
    # xijlin[0] + ReLU
    h = jnp.dot(w1_ref[...], xijT, preferred_element_type=jnp.float32) + b1_ref[...]
    h = jnp.maximum(h, 0.0).astype(dot_dtype)
    # xijlin[-1] and lin[0] folded into one exact linear (no activation between)
    h = jnp.dot(w23_ref[...], h, preferred_element_type=jnp.float32) + b23_ref[...]
    h = jnp.maximum(h, 0.0).astype(dot_dtype)
    # lin[-1]
    out = jnp.dot(w4_ref[...], h, preferred_element_type=jnp.float32) + b4_ref[...]
    out_ref[...] = out.astype(out_ref.dtype)


def _cn0_gather_kernel(ei_ref, xT_ref, w1_ref, b1_ref, w23_ref, b23_ref,
                       w4_ref, b4_ref, out_ref):
    """One E-tile: fused one-hot MXU gather (src+dst in one wide matmul) + MLP.

    All operands use the transposed layout [features, edges]: features on the
    sublane axis, the edge tile (multiple of 128) on the lane axis.
    """
    dot_dtype = xT_ref.dtype                  # bf16 default; f32 exact path
    n_nodes = xT_ref.shape[1]
    te = out_ref.shape[1]

    ei = ei_ref[...]                          # [1, 2*te] int32: [src | dst]
    # [N, 1] iota broadcast inside the compare (no [N, 2*te] iota materialized).
    node_ids = jax.lax.broadcasted_iota(jnp.int32, (n_nodes, 1), 0)
    oh = (node_ids == ei).astype(dot_dtype)   # [N, 2*te] exact 0/1 one-hot

    # Single wide gather matmul: x^T resident in VMEM, no xi/xj HBM round trip.
    xcat = jnp.dot(xT_ref[...], oh, preferred_element_type=jnp.float32)  # [C, 2*te]
    xijT = (xcat[:, :te] * xcat[:, te:]).astype(dot_dtype)               # [C, te]

    _mlp(xijT, w1_ref, b1_ref, w23_ref, b23_ref, w4_ref, b4_ref, out_ref)


def _cn0_pregather_kernel(xij_ref, w1_ref, b1_ref, w23_ref, b23_ref,
                          w4_ref, b4_ref, out_ref):
    """Large-N fallback: stream pre-gathered xij^T tiles, run only the MLP."""
    _mlp(xij_ref[...], w1_ref, b1_ref, w23_ref, b23_ref, w4_ref, b4_ref, out_ref)


def cn0_link_predictor_forward(x, tar_ei, params, *, tile_e=2048,
                               dot_dtype=jnp.bfloat16, gather_mode="auto",
                               lane_dense_output=False):
    """x: [N, C] f32 node features, tar_ei: [2, E] int32.

    Returns [E, O] f32 (or lane-dense [O, E] f32 if lane_dense_output=True).
    dot_dtype: MXU input dtype. bf16 (default) matches native MXU width on
      v5e/v6e/v7x; biases, elementwise product and accumulation stay f32.
    gather_mode: "onehot" (x^T resident, MXU one-hot gather), "pregather"
      (xij gathered in XLA, streamed), or "auto".
    """
    N, C = x.shape
    E = tar_ei.shape[1]
    H = params["w1"].shape[1]
    O = params["w4"].shape[1]
    itemsize = jnp.dtype(dot_dtype).itemsize

    assert tile_e % 128 == 0, "tile_e must be a multiple of 128 (lane width)"
    # Don't tile far past E; only force >=2 tiles on v7x (2 TensorCores) --
    # on single-TC v5e/v6e a split is pure pipeline-step overhead.
    tile_e = min(tile_e, pl.cdiv(E, 128) * 128)
    if _tensorcores_per_chip() >= 2 and pl.cdiv(E, tile_e) < 2 and tile_e > 128:
        tile_e = max(128, pl.cdiv(pl.cdiv(E, 2), 128) * 128)
    n_tiles = pl.cdiv(E, tile_e)
    e_pad = n_tiles * tile_e

    # Pick gather strategy: one-hot needs x^T resident (2x buffered) in VMEM
    # and O(N * te) compares per tile, so cap N / the resident footprint.
    if gather_mode == "auto":
        xT_bytes = N * C * itemsize
        gather_mode = "onehot" if (2 * xT_bytes <= 8 * 1024 * 1024
                                   and N <= 8192) else "pregather"
    assert gather_mode in ("onehot", "pregather")
    onehot = gather_mode == "onehot"

    # Fold the two back-to-back linears (no activation between): exact.
    hp = jax.lax.Precision.HIGHEST
    w23 = jnp.dot(params["w2"], params["w3"], precision=hp)
    b23 = jnp.dot(params["b2"], params["w3"], precision=hp) + params["b3"]

    # Transposed, lane-dense layout: features on sublanes, edges on lanes.
    w1T = params["w1"].T.astype(dot_dtype)            # [H, C]
    w23T = w23.T.astype(dot_dtype)                    # [H, H]
    w4T = params["w4"].T.astype(dot_dtype)            # [O, H]
    b1T = params["b1"].T.astype(jnp.float32)          # [H, 1]
    b23T = b23.T.astype(jnp.float32)                  # [H, 1]
    b4T = params["b4"].T.astype(jnp.float32)          # [O, 1]

    def resident(shape):
        return pl.BlockSpec(shape, lambda i: tuple(0 for _ in shape))

    weight_specs = [resident((H, C)), resident((H, 1)),
                    resident((H, H)), resident((H, 1)),
                    resident((O, H)), resident((O, 1))]
    weight_args = (w1T, b1T, w23T, b23T, w4T, b4T)
    weight_bytes = sum(int(a.size) * a.dtype.itemsize for a in weight_args)

    out_spec = pl.BlockSpec((O, tile_e), lambda i: (0, i))
    mlp_flops = 2 * e_pad * (C * H + H * H + H * O)

    if onehot:
        kernel = _cn0_gather_kernel
        xT = x.T.astype(dot_dtype)                    # [C, N] resident in VMEM
        # Pad the edge list (index 0 is a valid dummy; padded lanes are sliced
        # off below) and pre-concatenate src|dst per tile into a lane-dense
        # [1, 2*tile_e] slab so the kernel needs no in-kernel reshape.
        ei_pad = jnp.zeros((2, e_pad), jnp.int32).at[:, :E].set(
            tar_ei.astype(jnp.int32))
        ei_cat = (ei_pad.reshape(2, n_tiles, tile_e)
                  .transpose(1, 0, 2)
                  .reshape(1, n_tiles * 2 * tile_e))
        stream_args = (ei_cat, xT)
        stream_specs = [pl.BlockSpec((1, 2 * tile_e), lambda i: (0, i)),
                        resident((C, N))]
        per_tile_in = 2 * tile_e * 4
        resident_bytes = C * N * itemsize + weight_bytes
        interm_bytes = (N * 2 * tile_e * itemsize          # one-hot
                        + 2 * C * tile_e * 4               # gathered xcat
                        + 2 * H * tile_e * 4)              # hidden activations
        flops = 2 * C * N * 2 * e_pad + mlp_flops
    else:
        kernel = _cn0_pregather_kernel
        # Gather + elementwise product in XLA (f32), stream lane-dense tiles.
        xij = (x[tar_ei[0]] * x[tar_ei[1]]).T.astype(dot_dtype)   # [C, E]
        xijT = jnp.zeros((C, e_pad), dot_dtype).at[:, :E].set(xij)
        stream_args = (xijT,)
        stream_specs = [pl.BlockSpec((C, tile_e), lambda i: (0, i))]
        per_tile_in = C * tile_e * itemsize
        resident_bytes = weight_bytes
        interm_bytes = 2 * H * tile_e * 4
        flops = mlp_flops

    per_tile_out = O * tile_e * 4
    # Double-buffered streams + (compiler-double-buffered) residents +
    # intermediates, with headroom; clamped to v7x's 32 MiB scoped budget.
    # TODO(synk): on v7x, pipeline_mode=pl.Buffered(1) on the constant-index
    # residents would halve their footprint; kept default-buffered for safety.
    vmem_bytes = (2 * (per_tile_in + per_tile_out + resident_bytes)
                  + interm_bytes + (4 << 20))
    vmem_limit = int(min(max(vmem_bytes, 16 << 20), 32 << 20))

    bytes_accessed = (sum(int(a.size) * a.dtype.itemsize for a in stream_args)
                      + weight_bytes + O * e_pad * 4)

    outT = pl.pallas_call(
        kernel,
        out_shape=jax.ShapeDtypeStruct((O, e_pad), jnp.float32),
        grid_spec=pltpu.PrefetchScalarGridSpec(
            num_scalar_prefetch=0,
            grid=(n_tiles,),
            in_specs=list(stream_specs) + weight_specs,
            out_specs=out_spec,
        ),
        compiler_params=pltpu.CompilerParams(
            dimension_semantics=("parallel",),
            vmem_limit_bytes=vmem_limit,
        ),
        cost_estimate=pl.CostEstimate(
            flops=int(flops), transcendentals=0,
            bytes_accessed=int(bytes_accessed)),
    )(*stream_args, *weight_args)

    if lane_dense_output:
        return outT[:, :E]                    # lane-dense [O, E]
    return outT[:, :E].T                      # module layout [E, O]


def init_params(key, in_channels, hidden_channels, out_channels):
    """Deterministic synthetic parameters. Weights stored as (fan_in, fan_out)."""
    ks = jax.random.split(key, 8)

    def lin(kw, kb, fi, fo):
        bound = 1.0 / jnp.sqrt(fi)
        w = jax.random.uniform(kw, (fi, fo), jnp.float32, -bound, bound)
        b = jax.random.uniform(kb, (1, fo), jnp.float32, -bound, bound)
        return w, b

    w1, b1 = lin(ks[0], ks[1], in_channels, hidden_channels)      # xijlin[0]
    w2, b2 = lin(ks[2], ks[3], hidden_channels, hidden_channels)  # xijlin[-1]
    w3, b3 = lin(ks[4], ks[5], hidden_channels, hidden_channels)  # lin[0]
    w4, b4 = lin(ks[6], ks[7], hidden_channels, out_channels)     # lin[-1]
    # beta parameter exists in __init__ but is unused in forward().
    return dict(w1=w1, b1=b1, w2=w2, b2=b2, w3=w3, b3=b3, w4=w4, b4=b4)


def _reference(x, tar_ei, p):
    xi = x[tar_ei[0]]
    xj = x[tar_ei[1]]
    h = jnp.maximum((xi * xj) @ p["w1"] + p["b1"], 0.0)
    h = h @ p["w2"] + p["b2"]
    h = jnp.maximum(h @ p["w3"] + p["b3"], 0.0)
    return h @ p["w4"] + p["b4"]


if __name__ == "__main__":
    # Small shapes consistent with the module's forward; E deliberately not a
    # multiple of the tile size to exercise the padded last tile.
    N, IN_C, HID, OUT_C, E = 64, 16, 32, 8, 1000

    key = jax.random.PRNGKey(0)
    k_x, k_ei, k_p = jax.random.split(key, 3)

    x = jax.random.normal(k_x, (N, IN_C), jnp.float32)
    tar_ei = jax.random.randint(k_ei, (2, E), 0, N, jnp.int32)
    params = init_params(k_p, IN_C, HID, OUT_C)

    # DropEdge with dp = 0.0 (module default / eval mode) is the identity.
    tar_ei = drop_edge(tar_ei, dp=0.0)

    ref = _reference(x, tar_ei, params)

    # f32 dot-input path (exact module semantics, one-hot MXU gather).
    out = cn0_link_predictor_forward(x, tar_ei, params,
                                     dot_dtype=jnp.float32,
                                     gather_mode="onehot")
    out = jax.block_until_ready(out)
    assert out.shape == (E, OUT_C)
    assert jnp.allclose(out, ref, atol=1e-4, rtol=1e-4)

    # Default bf16 dot-input fast path (native MXU width on v5e/v6e/v7x);
    # accumulation and biases stay f32.
    out_bf16 = cn0_link_predictor_forward(x, tar_ei, params)
    out_bf16 = jax.block_until_ready(out_bf16)
    assert jnp.allclose(out_bf16, ref, atol=5e-2, rtol=5e-2)

    # Large-N fallback path (pre-gathered xij streamed, MLP-only kernel).
    out_pg = cn0_link_predictor_forward(x, tar_ei, params,
                                        gather_mode="pregather")
    out_pg = jax.block_until_ready(out_pg)
    assert jnp.allclose(out_pg, ref, atol=5e-2, rtol=5e-2)

    print("KERNEL_OK")
</pallas_src>

<mosaic_0001>
module attributes {stable_mosaic.version = 11 : i64} {
  func.func @_cn0_gather_kernel(%arg0: i32, %arg1: memref<1x2048xi32, #tpu.memory_space<vmem>>, %arg2: memref<16x64xf32, #tpu.memory_space<vmem>>, %arg3: memref<32x16xf32, #tpu.memory_space<vmem>>, %arg4: memref<32x1xf32, #tpu.memory_space<vmem>>, %arg5: memref<32x32xf32, #tpu.memory_space<vmem>>, %arg6: memref<32x1xf32, #tpu.memory_space<vmem>>, %arg7: memref<8x32xf32, #tpu.memory_space<vmem>>, %arg8: memref<8x1xf32, #tpu.memory_space<vmem>>, %arg9: memref<8x1024xf32, #tpu.memory_space<vmem>>) attributes {dimension_semantics = [#tpu.dimension_semantics<parallel>], iteration_bounds = array<i64: 1>, scalar_prefetch = 0 : i64, scratch_operands = 0 : i64, tpu.core_type = #tpu.core_type<tc>, window_params = [{transform_indices = @transform_0, window_bounds = array<i64: 1, 2048>}, {pipeline_mode = #tpu.pipeline_mode<synchronous>, transform_indices = @transform_1, window_bounds = array<i64: 16, 64>}, {pipeline_mode = #tpu.pipeline_mode<synchronous>, transform_indices = @transform_2, window_bounds = array<i64: 32, 16>}, {pipeline_mode = #tpu.pipeline_mode<synchronous>, transform_indices = @transform_3, window_bounds = array<i64: 32, 1>}, {pipeline_mode = #tpu.pipeline_mode<synchronous>, transform_indices = @transform_4, window_bounds = array<i64: 32, 32>}, {pipeline_mode = #tpu.pipeline_mode<synchronous>, transform_indices = @transform_5, window_bounds = array<i64: 32, 1>}, {pipeline_mode = #tpu.pipeline_mode<synchronous>, transform_indices = @transform_6, window_bounds = array<i64: 8, 32>}, {pipeline_mode = #tpu.pipeline_mode<synchronous>, transform_indices = @transform_7, window_bounds = array<i64: 8, 1>}, {transform_indices = @transform_8, window_bounds = array<i64: 8, 1024>}]} {
    %c0 = arith.constant 0 : index
    %c0_0 = arith.constant 0 : index
    %0 = vector.load %arg1[%c0, %c0_0] : memref<1x2048xi32, #tpu.memory_space<vmem>>, vector<1x2048xi32>
    %1 = tpu.iota {dimensions = array<i32: 0>} : vector<64x1xi32>
    %2 = vector.broadcast %1 : vector<64x1xi32> to vector<64x2048xi32>
    %3 = vector.broadcast %0 : vector<1x2048xi32> to vector<64x2048xi32>
    %4 = arith.cmpi eq, %2, %3 : vector<64x2048xi32>
    %5 = arith.extui %4 : vector<64x2048xi1> to vector<64x2048xi32>
    %6 = arith.sitofp %5 : vector<64x2048xi32> to vector<64x2048xf32>
    %c0_1 = arith.constant 0 : index
    %c0_2 = arith.constant 0 : index
    %7 = vector.load %arg2[%c0_1, %c0_2] : memref<16x64xf32, #tpu.memory_space<vmem>>, vector<16x64xf32>
    %cst = arith.constant dense<0.000000e+00> : vector<16x2048xf32>
    %8 = tpu.matmul %7, %6, %cst {dimension_numbers = #tpu.dot_dimension_numbers<[1], [0], [0], [1], [0, 0, 1, 1], [], []>} : vector<16x64xf32>, vector<64x2048xf32>, vector<16x2048xf32> -> vector<16x2048xf32>
    %9 = vector.extract_strided_slice %8 {offsets = [0, 0], sizes = [16, 1024], strides = [1, 1]} : vector<16x2048xf32> to vector<16x1024xf32>
    %10 = vector.extract_strided_slice %8 {offsets = [0, 1024], sizes = [16, 1024], strides = [1, 1]} : vector<16x2048xf32> to vector<16x1024xf32>
    %11 = arith.mulf %9, %10 : vector<16x1024xf32>
    %c0_3 = arith.constant 0 : index
    %c0_4 = arith.constant 0 : index
    %12 = vector.load %arg3[%c0_3, %c0_4] : memref<32x16xf32, #tpu.memory_space<vmem>>, vector<32x16xf32>
    %cst_5 = arith.constant dense<0.000000e+00> : vector<32x1024xf32>
    %13 = tpu.matmul %12, %11, %cst_5 {dimension_numbers = #tpu.dot_dimension_numbers<[1], [0], [0], [1], [0, 0, 1, 1], [], []>} : vector<32x16xf32>, vector<16x1024xf32>, vector<32x1024xf32> -> vector<32x1024xf32>
    %c0_6 = arith.constant 0 : index
    %c0_7 = arith.constant 0 : index
    %14 = vector.load %arg4[%c0_6, %c0_7] : memref<32x1xf32, #tpu.memory_space<vmem>>, vector<32x1xf32>
    %15 = vector.broadcast %14 : vector<32x1xf32> to vector<32x1024xf32>
    %16 = arith.addf %13, %15 : vector<32x1024xf32>
    %cst_8 = arith.constant 0.000000e+00 : f32
    %17 = vector.broadcast %cst_8 : f32 to vector<32x1024xf32>
    %18 = arith.maximumf %16, %17 : vector<32x1024xf32>
    %c0_9 = arith.constant 0 : index
    %c0_10 = arith.constant 0 : index
    %19 = vector.load %arg5[%c0_9, %c0_10] : memref<32x32xf32, #tpu.memory_space<vmem>>, vector<32x32xf32>
    %cst_11 = arith.constant dense<0.000000e+00> : vector<32x1024xf32>
    %20 = tpu.matmul %19, %18, %cst_11 {dimension_numbers = #tpu.dot_dimension_numbers<[1], [0], [0], [1], [0, 0, 1, 1], [], []>} : vector<32x32xf32>, vector<32x1024xf32>, vector<32x1024xf32> -> vector<32x1024xf32>
    %c0_12 = arith.constant 0 : index
    %c0_13 = arith.constant 0 : index
    %21 = vector.load %arg6[%c0_12, %c0_13] : memref<32x1xf32, #tpu.memory_space<vmem>>, vector<32x1xf32>
    %22 = vector.broadcast %21 : vector<32x1xf32> to vector<32x1024xf32>
    %23 = arith.addf %20, %22 : vector<32x1024xf32>
    %cst_14 = arith.constant 0.000000e+00 : f32
    %24 = vector.broadcast %cst_14 : f32 to vector<32x1024xf32>
    %25 = arith.maximumf %23, %24 : vector<32x1024xf32>
    %c0_15 = arith.constant 0 : index
    %c0_16 = arith.constant 0 : index
    %26 = vector.load %arg7[%c0_15, %c0_16] : memref<8x32xf32, #tpu.memory_space<vmem>>, vector<8x32xf32>
    %cst_17 = arith.constant dense<0.000000e+00> : vector<8x1024xf32>
    %27 = tpu.matmul %26, %25, %cst_17 {dimension_numbers = #tpu.dot_dimension_numbers<[1], [0], [0], [1], [0, 0, 1, 1], [], []>} : vector<8x32xf32>, vector<32x1024xf32>, vector<8x1024xf32> -> vector<8x1024xf32>
    %c0_18 = arith.constant 0 : index
    %c0_19 = arith.constant 0 : index
    %28 = vector.load %arg8[%c0_18, %c0_19] : memref<8x1xf32, #tpu.memory_space<vmem>>, vector<8x1xf32>
    %29 = vector.broadcast %28 : vector<8x1xf32> to vector<8x1024xf32>
    %30 = arith.addf %27, %29 : vector<8x1024xf32>
    %c0_20 = arith.constant 0 : index
    %c0_21 = arith.constant 0 : index
    %31 = vector.load %arg9[%c0_20, %c0_21] : memref<8x1024xf32, #tpu.memory_space<vmem>>, vector<8x1024xf32>
    tpu.vector_store %arg9[%c0_20, %c0_21], %30 {strides = array<i32>} : memref<8x1024xf32, #tpu.memory_space<vmem>>, vector<8x1024xf32>,
    return
  }
  func.func @transform_0(%arg0: i32) -> (i32, i32) {
    %c0_i32 = arith.constant 0 : i32
    %c0_i32_0 = arith.constant 0 : i32
    return %c0_i32, %arg0 : i32, i32
  }
  func.func @transform_1(%arg0: i32) -> (i32, i32) {
    %c0_i32 = arith.constant 0 : i32
    %c0_i32_0 = arith.constant 0 : i32
    %c0_i32_1 = arith.constant 0 : i32
    return %c0_i32, %c0_i32_0 : i32, i32
  }
  func.func @transform_2(%arg0: i32) -> (i32, i32) {
    %c0_i32 = arith.constant 0 : i32
    %c0_i32_0 = arith.constant 0 : i32
    %c0_i32_1 = arith.constant 0 : i32
    return %c0_i32, %c0_i32_0 : i32, i32
  }
  func.func @transform_3(%arg0: i32) -> (i32, i32) {
    %c0_i32 = arith.constant 0 : i32
    %c0_i32_0 = arith.constant 0 : i32
    %c0_i32_1 = arith.constant 0 : i32
    return %c0_i32, %c0_i32_0 : i32, i32
  }
  func.func @transform_4(%arg0: i32) -> (i32, i32) {
    %c0_i32 = arith.constant 0 : i32
    %c0_i32_0 = arith.constant 0 : i32
    %c0_i32_1 = arith.constant 0 : i32
    return %c0_i32, %c0_i32_0 : i32, i32
  }
  func.func @transform_5(%arg0: i32) -> (i32, i32) {
    %c0_i32 = arith.constant 0 : i32
    %c0_i32_0 = arith.constant 0 : i32
    %c0_i32_1 = arith.constant 0 : i32
    return %c0_i32, %c0_i32_0 : i32, i32
  }
  func.func @transform_6(%arg0: i32) -> (i32, i32) {
    %c0_i32 = arith.constant 0 : i32
    %c0_i32_0 = arith.constant 0 : i32
    %c0_i32_1 = arith.constant 0 : i32
    return %c0_i32, %c0_i32_0 : i32, i32
  }
  func.func @transform_7(%arg0: i32) -> (i32, i32) {
    %c0_i32 = arith.constant 0 : i32
    %c0_i32_0 = arith.constant 0 : i32
    %c0_i32_1 = arith.constant 0 : i32
    return %c0_i32, %c0_i32_0 : i32, i32
  }
  func.func @transform_8(%arg0: i32) -> (i32, i32) {
    %c0_i32 = arith.constant 0 : i32
    %c0_i32_0 = arith.constant 0 : i32
    return %c0_i32, %arg0 : i32, i32
  }
}

</mosaic_0001>

<llo_original>
// kernel: tpu_custom_call.1
$region0: #{tpu_custom_call.1}
  #allocation0 [shape = 'u32[]', space=smem, size = 0x4, offset = 0x4, fixed_abs, tag = 'smem constant byte address 0x4 - core index']
  #allocation1 [shape = 'u32[72,128]{1,0:T(1,128)}', space=vmem, size = 0x9000, scoped, tag = 'internal scratch']
  %s0 = inlined_call_operand.vmem [shape: s32[1,2048], index: 0, kind: input, shape index: {}]
  %s1 = inlined_call_operand.vmem [shape: f32[16,64], index: 1, kind: input, shape index: {}]
  %s2 = inlined_call_operand.vmem [shape: f32[32,16], index: 2, kind: input, shape index: {}]
  %s3 = inlined_call_operand.vmem [shape: f32[32,1], index: 3, kind: input, shape index: {}]
  %s4 = inlined_call_operand.vmem [shape: f32[32,32], index: 4, kind: input, shape index: {}]
  %s5 = inlined_call_operand.vmem [shape: f32[32,1], index: 5, kind: input, shape index: {}]
  %s6 = inlined_call_operand.vmem [shape: f32[8,32], index: 6, kind: input, shape index: {}]
  %s7 = inlined_call_operand.vmem [shape: f32[8,1], index: 7, kind: input, shape index: {}]
  %s8 = inlined_call_operand.hbm [shape: f32[8,1024], index: 8, kind: output, shape index: {}]
  %s9 = sld [smem:[#allocation0]]
  $region42: #{tpu_custom_call.1} parent=0
    _
  %s11 = ssub.s32 1, %s9
  %s12 = scalar_select 0, %s11, %s9
  $region1: #{tpu_custom_call.1} parent=0
    #allocation2 [shape = 'u8[32768]{0}', space=vmem, size = 0x8000, scoped, tag = 'output window, operand 0, single buffered']
    #allocation3 [shape = 's32[1]{0}', space=sflag, size = 0x4, scoped, tag = 'scoped memory for tpu_custom_call.1']
    %13 = vsyncpa [#allocation3], 0
    // Predicated region
    $region2: #{tpu_custom_call.1} parent=1 // pred_check
      _
    $region3: #{tpu_custom_call.1} parent=1 // pred_check_branch
      %15 = sbr.rel (0) target = $region5
    $region4: #{tpu_custom_call.1} parent=1 // pred_region
      _
    $region5: #{tpu_custom_call.1} parent=1 // pred_fallthru
      _
    // Predicated region
    $region6: #{tpu_custom_call.1} parent=1 // pred_check
      _
    $region7: #{tpu_custom_call.1} parent=1 // pred_check_branch
      %17 = sbr.rel (0) target = $region9
    $region8: #{tpu_custom_call.1} parent=1 // pred_region
      _
    $region9: #{tpu_custom_call.1} parent=1 // pred_fallthru
      _
    // Predicated region
    $region10: #{tpu_custom_call.1} parent=1 // pred_check
      _
    $region11: #{tpu_custom_call.1} parent=1 // pred_check_branch
      %19 = sbr.rel (0) target = $region13
    $region12: #{tpu_custom_call.1} parent=1 // pred_region
      _
    $region13: #{tpu_custom_call.1} parent=1 // pred_fallthru
      _
    // Predicated region
    $region14: #{tpu_custom_call.1} parent=1 // pred_check
      _
    $region15: #{tpu_custom_call.1} parent=1 // pred_check_branch
      %21 = sbr.rel (0) target = $region17
    $region16: #{tpu_custom_call.1} parent=1 // pred_region
      _
    $region17: #{tpu_custom_call.1} parent=1 // pred_fallthru
      _
    // Predicated region
    $region18: #{tpu_custom_call.1} parent=1 // pred_check
      _
    $region19: #{tpu_custom_call.1} parent=1 // pred_check_branch
      %23 = sbr.rel (0) target = $region21
    $region20: #{tpu_custom_call.1} parent=1 // pred_region
      _
    $region21: #{tpu_custom_call.1} parent=1 // pred_fallthru
      _
    // Predicated region
    $region22: #{tpu_custom_call.1} parent=1 // pred_check
      _
    $region23: #{tpu_custom_call.1} parent=1 // pred_check_branch
      %25 = sbr.rel (0) target = $region25
    $region24: #{tpu_custom_call.1} parent=1 // pred_region
      _
    $region25: #{tpu_custom_call.1} parent=1 // pred_fallthru
      _
    // Predicated region
    $region26: #{tpu_custom_call.1} parent=1 // pred_check
      _
    $region27: #{tpu_custom_call.1} parent=1 // pred_check_branch
      %27 = sbr.rel (0) target = $region29
    $region28: #{tpu_custom_call.1} parent=1 // pred_region
      _
    $region29: #{tpu_custom_call.1} parent=1 // pred_fallthru
      _
    // Predicated region
    $region30: #{tpu_custom_call.1} parent=1 // pred_check
      _
    $region31: #{tpu_custom_call.1} parent=1 // pred_check_branch
      %29 = sbr.rel (0) target = $region33
    $region32: #{tpu_custom_call.1} parent=1 // pred_region
      _
    $region33: #{tpu_custom_call.1} parent=1 // pred_fallthru
      _
    %v30 = vld [vmem:[%s0] sm:$0xff]
    %v31 = vld [vmem:[%s0 + $0x8] sm:$0xff]
    %v32 = vlaneseq
    %v33 = vshrl.u32 %v32, 7
    %v34 = vadd.s32 %v33, 8
    %v35 = vadd.s32 %v33, 16
    %v36 = vadd.s32 %v33, 24
    %v37 = vadd.s32 %v33, 32
    %v38 = vadd.s32 %v33, 40
    %v39 = vadd.s32 %v33, 48
    %v40 = vadd.s32 %v33, 56
    %v41 = vperm.slane %v30, 0
    %v42 = vperm.slane %v30, 1
    %v43 = vperm.slane %v30, 2
    %v44 = vperm.slane %v30, 3
    %v45 = vperm.slane %v30, 4
    %v46 = vperm.slane %v30, 5
    %v47 = vperm.slane %v30, 6
    %v48 = vperm.slane %v30, 7
    %v49 = vperm.slane %v31, 0
    %v50 = vperm.slane %v31, 1
    %v51 = vperm.slane %v31, 2
    %v52 = vperm.slane %v31, 3
    %v53 = vperm.slane %v31, 4
    %v54 = vperm.slane %v31, 5
    %v55 = vperm.slane %v31, 6
    %v56 = vperm.slane %v31, 7
    %vm57 = vcmp.eq.s32.totalorder %v33, %v41
    %vm58 = vcmp.eq.s32.totalorder %v33, %v42
    %vm59 = vcmp.eq.s32.totalorder %v33, %v43
    %vm60 = vcmp.eq.s32.totalorder %v33, %v44
    %vm61 = vcmp.eq.s32.totalorder %v33, %v45
    %vm62 = vcmp.eq.s32.totalorder %v33, %v46
    %vm63 = vcmp.eq.s32.totalorder %v33, %v47
    %vm64 = vcmp.eq.s32.totalorder %v33, %v48
    %vm65 = vcmp.eq.s32.totalorder %v33, %v49
    %vm66 = vcmp.eq.s32.totalorder %v33, %v50
    %vm67 = vcmp.eq.s32.totalorder %v33, %v51
    %vm68 = vcmp.eq.s32.totalorder %v33, %v52
    %vm69 = vcmp.eq.s32.totalorder %v33, %v53
    %vm70 = vcmp.eq.s32.totalorder %v33, %v54
    %vm71 = vcmp.eq.s32.totalorder %v33, %v55
    %vm72 = vcmp.eq.s32.totalorder %v33, %v56
    %vm73 = vcmp.eq.s32.totalorder %v34, %v41
    %vm74 = vcmp.eq.s32.totalorder %v34, %v42
    %vm75 = vcmp.eq.s32.totalorder %v34, %v43
    %vm76 = vcmp.eq.s32.totalorder %v34, %v44
    %vm77 = vcmp.eq.s32.totalorder %v34, %v45
    %vm78 = vcmp.eq.s32.totalorder %v34, %v46
    %vm79 = vcmp.eq.s32.totalorder %v34, %v47
    %vm80 = vcmp.eq.s32.totalorder %v34, %v48
    %vm81 = vcmp.eq.s32.totalorder %v34, %v49
    %vm82 = vcmp.eq.s32.totalorder %v34, %v50
    %vm83 = vcmp.eq.s32.totalorder %v34, %v51
    %vm84 = vcmp.eq.s32.totalorder %v34, %v52
    %vm85 = vcmp.eq.s32.totalorder %v34, %v53
    %vm86 = vcmp.eq.s32.totalorder %v34, %v54
    %vm87 = vcmp.eq.s32.totalorder %v34, %v55
    %vm88 = vcmp.eq.s32.totalorder %v34, %v56
    %vm89 = vcmp.eq.s32.totalorder %v35, %v41
    %vm90 = vcmp.eq.s32.totalorder %v35, %v42
    %vm91 = vcmp.eq.s32.totalorder %v35, %v43
    %vm92 = vcmp.eq.s32.totalorder %v35, %v44
    %vm93 = vcmp.eq.s32.totalorder %v35, %v45
    %vm94 = vcmp.eq.s32.totalorder %v35, %v46
    %vm95 = vcmp.eq.s32.totalorder %v35, %v47
    %vm96 = vcmp.eq.s32.totalorder %v35, %v48
    %vm97 = vcmp.eq.s32.totalorder %v35, %v49
    %vm98 = vcmp.eq.s32.totalorder %v35, %v50
    %vm99 = vcmp.eq.s32.totalorder %v35, %v51
    %vm100 = vcmp.eq.s32.totalorder %v35, %v52
    %vm101 = vcmp.eq.s32.totalorder %v35, %v53
    %vm102 = vcmp.eq.s32.totalorder %v35, %v54
    %vm103 = vcmp.eq.s32.totalorder %v35, %v55
    %vm104 = vcmp.eq.s32.totalorder %v35, %v56
    %vm105 = vcmp.eq.s32.totalorder %v36, %v41
    %vm106 = vcmp.eq.s32.totalorder %v36, %v42
    %vm107 = vcmp.eq.s32.totalorder %v36, %v43
    %vm108 = vcmp.eq.s32.totalorder %v36, %v44
    %vm109 = vcmp.eq.s32.totalorder %v36, %v45
    %vm110 = vcmp.eq.s32.totalorder %v36, %v46
    %vm111 = vcmp.eq.s32.totalorder %v36, %v47
    %vm112 = vcmp.eq.s32.totalorder %v36, %v48
    %vm113 = vcmp.eq.s32.totalorder %v36, %v49
    %vm114 = vcmp.eq.s32.totalorder %v36, %v50
    %vm115 = vcmp.eq.s32.totalorder %v36, %v51
    %vm116 = vcmp.eq.s32.totalorder %v36, %v52
    %vm117 = vcmp.eq.s32.totalorder %v36, %v53
    %vm118 = vcmp.eq.s32.totalorder %v36, %v54
    %vm119 = vcmp.eq.s32.totalorder %v36, %v55
    %vm120 = vcmp.eq.s32.totalorder %v36, %v56
    %vm121 = vcmp.eq.s32.totalorder %v37, %v41
    %vm122 = vcmp.eq.s32.totalorder %v37, %v42
    %vm123 = vcmp.eq.s32.totalorder %v37, %v43
    %vm124 = vcmp.eq.s32.totalorder %v37, %v44
    %vm125 = vcmp.eq.s32.totalorder %v37, %v45
    %vm126 = vcmp.eq.s32.totalorder %v37, %v46
    %vm127 = vcmp.eq.s32.totalorder %v37, %v47
    %vm128 = vcmp.eq.s32.totalorder %v37, %v48
    %vm129 = vcmp.eq.s32.totalorder %v37, %v49
    %vm130 = vcmp.eq.s32.totalorder %v37, %v50
    %vm131 = vcmp.eq.s32.totalorder %v37, %v51
    %vm132 = vcmp.eq.s32.totalorder %v37, %v52
    %vm133 = vcmp.eq.s32.totalorder %v37, %v53
    %vm134 = vcmp.eq.s32.totalorder %v37, %v54
    %vm135 = vcmp.eq.s32.totalorder %v37, %v55
    %vm136 = vcmp.eq.s32.totalorder %v37, %v56
    %vm137 = vcmp.eq.s32.totalorder %v38, %v41
    %vm138 = vcmp.eq.s32.totalorder %v38, %v42
    %vm139 = vcmp.eq.s32.totalorder %v38, %v43
    %vm140 = vcmp.eq.s32.totalorder %v38, %v44
    %vm141 = vcmp.eq.s32.totalorder %v38, %v45
    %vm142 = vcmp.eq.s32.totalorder %v38, %v46
    %vm143 = vcmp.eq.s32.totalorder %v38, %v47
    %vm144 = vcmp.eq.s32.totalorder %v38, %v48
    %vm145 = vcmp.eq.s32.totalorder %v38, %v49
    %vm146 = vcmp.eq.s32.totalorder %v38, %v50
    %vm147 = vcmp.eq.s32.totalorder %v38, %v51
    %vm148 = vcmp.eq.s32.totalorder %v38, %v52
    %vm149 = vcmp.eq.s32.totalorder %v38, %v53
    %vm150 = vcmp.eq.s32.totalorder %v38, %v54
    %vm151 = vcmp.eq.s32.totalorder %v38, %v55
    %vm152 = vcmp.eq.s32.totalorder %v38, %v56
    %vm153 = vcmp.eq.s32.totalorder %v39, %v41
    %vm154 = vcmp.eq.s32.totalorder %v39, %v42
    %vm155 = vcmp.eq.s32.totalorder %v39, %v43
    %vm156 = vcmp.eq.s32.totalorder %v39, %v44
    %vm157 = vcmp.eq.s32.totalorder %v39, %v45
    %vm158 = vcmp.eq.s32.totalorder %v39, %v46
    %vm159 = vcmp.eq.s32.totalorder %v39, %v47
    %vm160 = vcmp.eq.s32.totalorder %v39, %v48
    %vm161 = vcmp.eq.s32.totalorder %v39, %v49
    %vm162 = vcmp.eq.s32.totalorder %v39, %v50
    %vm163 = vcmp.eq.s32.totalorder %v39, %v51
    %vm164 = vcmp.eq.s32.totalorder %v39, %v52
    %vm165 = vcmp.eq.s32.totalorder %v39, %v53
    %vm166 = vcmp.eq.s32.totalorder %v39, %v54
    %vm167 = vcmp.eq.s32.totalorder %v39, %v55
    %vm168 = vcmp.eq.s32.totalorder %v39, %v56
    %vm169 = vcmp.eq.s32.totalorder %v40, %v41
    %vm170 = vcmp.eq.s32.totalorder %v40, %v42
    %vm171 = vcmp.eq.s32.totalorder %v40, %v43
    %vm172 = vcmp.eq.s32.totalorder %v40, %v44
    %vm173 = vcmp.eq.s32.totalorder %v40, %v45
    %vm174 = vcmp.eq.s32.totalorder %v40, %v46
    %vm175 = vcmp.eq.s32.totalorder %v40, %v47
    %vm176 = vcmp.eq.s32.totalorder %v40, %v48
    %vm177 = vcmp.eq.s32.totalorder %v40, %v49
    %vm178 = vcmp.eq.s32.totalorder %v40, %v50
    %vm179 = vcmp.eq.s32.totalorder %v40, %v51
    %vm180 = vcmp.eq.s32.totalorder %v40, %v52
    %vm181 = vcmp.eq.s32.totalorder %v40, %v53
    %vm182 = vcmp.eq.s32.totalorder %v40, %v54
    %vm183 = vcmp.eq.s32.totalorder %v40, %v55
    %vm184 = vcmp.eq.s32.totalorder %v40, %v56
    %v185 = vsel %vm57, 1, 0
    %v186 = vsel %vm58, 1, 0
    %v187 = vsel %vm59, 1, 0
    %v188 = vsel %vm60, 1, 0
    %v189 = vsel %vm61, 1, 0
    %v190 = vsel %vm62, 1, 0
    %v191 = vsel %vm63, 1, 0
    %v192 = vsel %vm64, 1, 0
    %v193 = vsel %vm65, 1, 0
    %v194 = vsel %vm66, 1, 0
    %v195 = vsel %vm67, 1, 0
    %v196 = vsel %vm68, 1, 0
    %v197 = vsel %vm69, 1, 0
    %v198 = vsel %vm70, 1, 0
    %v199 = vsel %vm71, 1, 0
    %v200 = vsel %vm72, 1, 0
    %v201 = vsel %vm73, 1, 0
    %v202 = vsel %vm74, 1, 0
    %v203 = vsel %vm75, 1, 0
    %v204 = vsel %vm76, 1, 0
    %v205 = vsel %vm77, 1, 0
    %v206 = vsel %vm78, 1, 0
    %v207 = vsel %vm79, 1, 0
    %v208 = vsel %vm80, 1, 0
    %v209 = vsel %vm81, 1, 0
    %v210 = vsel %vm82, 1, 0
    %v211 = vsel %vm83, 1, 0
    %v212 = vsel %vm84, 1, 0
    %v213 = vsel %vm85, 1, 0
    %v214 = vsel %vm86, 1, 0
    %v215 = vsel %vm87, 1, 0
    %v216 = vsel %vm88, 1, 0
    %v217 = vsel %vm89, 1, 0
    %v218 = vsel %vm90, 1, 0
    %v219 = vsel %vm91, 1, 0
    %v220 = vsel %vm92, 1, 0
    %v221 = vsel %vm93, 1, 0
    %v222 = vsel %vm94, 1, 0
    %v223 = vsel %vm95, 1, 0
    %v224 = vsel %vm96, 1, 0
    %v225 = vsel %vm97, 1, 0
    %v226 = vsel %vm98, 1, 0
    %v227 = vsel %vm99, 1, 0
    %v228 = vsel %vm100, 1, 0
    %v229 = vsel %vm101, 1, 0
    %v230 = vsel %vm102, 1, 0
    %v231 = vsel %vm103, 1, 0
    %v232 = vsel %vm104, 1, 0
    %v233 = vsel %vm105, 1, 0
    %v234 = vsel %vm106, 1, 0
    %v235 = vsel %vm107, 1, 0
    %v236 = vsel %vm108, 1, 0
    %v237 = vsel %vm109, 1, 0
    %v238 = vsel %vm110, 1, 0
    %v239 = vsel %vm111, 1, 0
    %v240 = vsel %vm112, 1, 0
    %v241 = vsel %vm113, 1, 0
    %v242 = vsel %vm114, 1, 0
    %v243 = vsel %vm115, 1, 0
    %v244 = vsel %vm116, 1, 0
    %v245 = vsel %vm117, 1, 0
    %v246 = vsel %vm118, 1, 0
    %v247 = vsel %vm119, 1, 0
    %v248 = vsel %vm120, 1, 0
    %v249 = vsel %vm121, 1, 0
    %v250 = vsel %vm122, 1, 0
    %v251 = vsel %vm123, 1, 0
    %v252 = vsel %vm124, 1, 0
    %v253 = vsel %vm125, 1, 0
    %v254 = vsel %vm126, 1, 0
    %v255 = vsel %vm127, 1, 0
    %v256 = vsel %vm128, 1, 0
    %v257 = vsel %vm129, 1, 0
    %v258 = vsel %vm130, 1, 0
    %v259 = vsel %vm131, 1, 0
    %v260 = vsel %vm132, 1, 0
    %v261 = vsel %vm133, 1, 0
    %v262 = vsel %vm134, 1, 0
    %v263 = vsel %vm135, 1, 0
    %v264 = vsel %vm136, 1, 0
    %v265 = vsel %vm137, 1, 0
    %v266 = vsel %vm138, 1, 0
    %v267 = vsel %vm139, 1, 0
    %v268 = vsel %vm140, 1, 0
    %v269 = vsel %vm141, 1, 0
    %v270 = vsel %vm142, 1, 0
    %v271 = vsel %vm143, 1, 0
    %v272 = vsel %vm144, 1, 0
    %v273 = vsel %vm145, 1, 0
    %v274 = vsel %vm146, 1, 0
    %v275 = vsel %vm147, 1, 0
    %v276 = vsel %vm148, 1, 0
    %v277 = vsel %vm149, 1, 0
    %v278 = vsel %vm150, 1, 0
    %v279 = vsel %vm151, 1, 0
    %v280 = vsel %vm152, 1, 0
    %v281 = vsel %vm153, 1, 0
    %v282 = vsel %vm154, 1, 0
    %v283 = vsel %vm155, 1, 0
    %v284 = vsel %vm156, 1, 0
    %v285 = vsel %vm157, 1, 0
    %v286 = vsel %vm158, 1, 0
    %v287 = vsel %vm159, 1, 0
    %v288 = vsel %vm160, 1, 0
    %v289 = vsel %vm161, 1, 0
    %v290 = vsel %vm162, 1, 0
    %v291 = vsel %vm163, 1, 0
    %v292 = vsel %vm164, 1, 0
    %v293 = vsel %vm165, 1, 0
    %v294 = vsel %vm166, 1, 0
    %v295 = vsel %vm167, 1, 0
    %v296 = vsel %vm168, 1, 0
    %v297 = vsel %vm169, 1, 0
    %v298 = vsel %vm170, 1, 0
    %v299 = vsel %vm171, 1, 0
    %v300 = vsel %vm172, 1, 0
    %v301 = vsel %vm173, 1, 0
    %v302 = vsel %vm174, 1, 0
    %v303 = vsel %vm175, 1, 0
    %v304 = vsel %vm176, 1, 0
    %v305 = vsel %vm177, 1, 0
    %v306 = vsel %vm178, 1, 0
    %v307 = vsel %vm179, 1, 0
    %v308 = vsel %vm180, 1, 0
    %v309 = vsel %vm181, 1, 0
    %v310 = vsel %vm182, 1, 0
    %v311 = vsel %vm183, 1, 0
    %v312 = vsel %vm184, 1, 0
    %v313 = vcvt.s32.f32 %v185
    %v314 = vcvt.s32.f32 %v186
    %v315 = vcvt.s32.f32 %v187
    %v316 = vcvt.s32.f32 %v188
    %v317 = vcvt.s32.f32 %v189
    %v318 = vcvt.s32.f32 %v190
    %v319 = vcvt.s32.f32 %v191
    %v320 = vcvt.s32.f32 %v192
    %v321 = vcvt.s32.f32 %v193
    %v322 = vcvt.s32.f32 %v194
    %v323 = vcvt.s32.f32 %v195
    %v324 = vcvt.s32.f32 %v196
    %v325 = vcvt.s32.f32 %v197
    %v326 = vcvt.s32.f32 %v198
    %v327 = vcvt.s32.f32 %v199
    %v328 = vcvt.s32.f32 %v200
    %v329 = vcvt.s32.f32 %v201
    %v330 = vcvt.s32.f32 %v202
    %v331 = vcvt.s32.f32 %v203
    %v332 = vcvt.s32.f32 %v204
    %v333 = vcvt.s32.f32 %v205
    %v334 = vcvt.s32.f32 %v206
    %v335 = vcvt.s32.f32 %v207
    %v336 = vcvt.s32.f32 %v208
    %v337 = vcvt.s32.f32 %v209
    %v338 = vcvt.s32.f32 %v210
    %v339 = vcvt.s32.f32 %v211
    %v340 = vcvt.s32.f32 %v212
    %v341 = vcvt.s32.f32 %v213
    %v342 = vcvt.s32.f32 %v214
    %v343 = vcvt.s32.f32 %v215
    %v344 = vcvt.s32.f32 %v216
    %v345 = vcvt.s32.f32 %v217
    %v346 = vcvt.s32.f32 %v218
    %v347 = vcvt.s32.f32 %v219
    %v348 = vcvt.s32.f32 %v220
    %v349 = vcvt.s32.f32 %v221
    %v350 = vcvt.s32.f32 %v222
    %v351 = vcvt.s32.f32 %v223
    %v352 = vcvt.s32.f32 %v224
    %v353 = vcvt.s32.f32 %v225
    %v354 = vcvt.s32.f32 %v226
    %v355 = vcvt.s32.f32 %v227
    %v356 = vcvt.s32.f32 %v228
    %v357 = vcvt.s32.f32 %v229
    %v358 = vcvt.s32.f32 %v230
    %v359 = vcvt.s32.f32 %v231
    %v360 = vcvt.s32.f32 %v232
    %v361 = vcvt.s32.f32 %v233
    %v362 = vcvt.s32.f32 %v234
    %v363 = vcvt.s32.f32 %v235
    %v364 = vcvt.s32.f32 %v236
    %v365 = vcvt.s32.f32 %v237
    %v366 = vcvt.s32.f32 %v238
    %v367 = vcvt.s32.f32 %v239
    %v368 = vcvt.s32.f32 %v240
    %v369 = vcvt.s32.f32 %v241
    %v370 = vcvt.s32.f32 %v242
    %v371 = vcvt.s32.f32 %v243
    %v372 = vcvt.s32.f32 %v244
    %v373 = vcvt.s32.f32 %v245
    %v374 = vcvt.s32.f32 %v246
    %v375 = vcvt.s32.f32 %v247
    %v376 = vcvt.s32.f32 %v248
    %v377 = vcvt.s32.f32 %v249
    %v378 = vcvt.s32.f32 %v250
    %v379 = vcvt.s32.f32 %v251
    %v380 = vcvt.s32.f32 %v252
    %v381 = vcvt.s32.f32 %v253
    %v382 = vcvt.s32.f32 %v254
    %v383 = vcvt.s32.f32 %v255
    %v384 = vcvt.s32.f32 %v256
    %v385 = vcvt.s32.f32 %v257
    %v386 = vcvt.s32.f32 %v258
    %v387 = vcvt.s32.f32 %v259
    %v388 = vcvt.s32.f32 %v260
    %v389 = vcvt.s32.f32 %v261
    %v390 = vcvt.s32.f32 %v262
    %v391 = vcvt.s32.f32 %v263
    %v392 = vcvt.s32.f32 %v264
    %v393 = vcvt.s32.f32 %v265
    %v394 = vcvt.s32.f32 %v266
    %v395 = vcvt.s32.f32 %v267
    %v396 = vcvt.s32.f32 %v268
    %v397 = vcvt.s32.f32 %v269
    %v398 = vcvt.s32.f32 %v270
    %v399 = vcvt.s32.f32 %v271
    %v400 = vcvt.s32.f32 %v272
    %v401 = vcvt.s32.f32 %v273
    %v402 = vcvt.s32.f32 %v274
    %v403 = vcvt.s32.f32 %v275
    %v404 = vcvt.s32.f32 %v276
    %v405 = vcvt.s32.f32 %v277
    %v406 = vcvt.s32.f32 %v278
    %v407 = vcvt.s32.f32 %v279
    %v408 = vcvt.s32.f32 %v280
    %v409 = vcvt.s32.f32 %v281
    %v410 = vcvt.s32.f32 %v282
    %v411 = vcvt.s32.f32 %v283
    %v412 = vcvt.s32.f32 %v284
    %v413 = vcvt.s32.f32 %v285
    %v414 = vcvt.s32.f32 %v286
    %v415 = vcvt.s32.f32 %v287
    %v416 = vcvt.s32.f32 %v288
    %v417 = vcvt.s32.f32 %v289
    %v418 = vcvt.s32.f32 %v290
    %v419 = vcvt.s32.f32 %v291
    %v420 = vcvt.s32.f32 %v292
    %v421 = vcvt.s32.f32 %v293
    %v422 = vcvt.s32.f32 %v294
    %v423 = vcvt.s32.f32 %v295
    %v424 = vcvt.s32.f32 %v296
    %v425 = vcvt.s32.f32 %v297
    %v426 = vcvt.s32.f32 %v298
    %v427 = vcvt.s32.f32 %v299
    %v428 = vcvt.s32.f32 %v300
    %v429 = vcvt.s32.f32 %v301
    %v430 = vcvt.s32.f32 %v302
    %v431 = vcvt.s32.f32 %v303
    %v432 = vcvt.s32.f32 %v304
    %v433 = vcvt.s32.f32 %v305
    %v434 = vcvt.s32.f32 %v306
    %v435 = vcvt.s32.f32 %v307
    %v436 = vcvt.s32.f32 %v308
    %v437 = vcvt.s32.f32 %v309
    %v438 = vcvt.s32.f32 %v310
    %v439 = vcvt.s32.f32 %v311
    %v440 = vcvt.s32.f32 %v312
    %v441 = vld [vmem:[%s1] sm:$0xff]
    %v442 = vld [vmem:[%s1 + $0x8] sm:$0xff]
    %vm443 = vcmask 523264
    %v445 = vsel %vm443, %v441, 0
    %v448 = vsel %vm443, %v442, 0
    %450 = vmatpush.msra.mxu0 0.0
    %451 = vmatpush.msra.mxu0 0.0
    %452 = vmatpush.msra.mxu0 0.0
    %453 = vmatpush.msra.mxu0 0.0
    %454 = vmatpush.msra.mxu0 0.0
    %455 = vmatpush.msra.mxu0 0.0
    %456 = vmatpush.msra.mxu0 0.0
    %457 = vmatpush.msra.mxu0 0.0
    %458 = vmatpush.msra.mxu0 %v425
    %459 = vmatpush.msra.mxu0 %v409
    %460 = vmatpush.msra.mxu0 %v393
    %461 = vmatpush.msra.mxu0 %v377
    %462 = vmatpush.msra.mxu0 %v361
    %463 = vmatpush.msra.mxu0 %v345
    %464 = vmatpush.msra.mxu0 %v329
    %465 = vmatpush.msra.mxu0 %v313
    %466 = vmatmul.f32.gmra.mxu0 %v445
    %v467 = vpop.f32.mrf.mxu0
    %v468 = vadd.f32 0.0, %v467
    %469 = vmatmul.f32.gmra.mxu0 %v448
    %v470 = vpop.f32.mrf.mxu0
    %v471 = vadd.f32 0.0, %v470
    %472 = vdwg.mxu0
    %473 = vmatpush.msra.mxu0 0.0
    %474 = vmatpush.msra.mxu0 0.0
    %475 = vmatpush.msra.mxu0 0.0
    %476 = vmatpush.msra.mxu0 0.0
    %477 = vmatpush.msra.mxu0 0.0
    %478 = vmatpush.msra.mxu0 0.0
    %479 = vmatpush.msra.mxu0 0.0
    %480 = vmatpush.msra.mxu0 0.0
    %481 = vmatpush.msra.mxu0 %v426
    %482 = vmatpush.msra.mxu0 %v410
    %483 = vmatpush.msra.mxu0 %v394
    %484 = vmatpush.msra.mxu0 %v378
    %485 = vmatpush.msra.mxu0 %v362
    %486 = vmatpush.msra.mxu0 %v346
    %487 = vmatpush.msra.mxu0 %v330
    %488 = vmatpush.msra.mxu0 %v314
    %489 = vmatmul.f32.gmra.mxu0 %v445
    %v490 = vpop.f32.mrf.mxu0
    %v491 = vadd.f32 0.0, %v490
    %492 = vmatmul.f32.gmra.mxu0 %v448
    %v493 = vpop.f32.mrf.mxu0
    %v494 = vadd.f32 0.0, %v493
    %495 = vdwg.mxu0
    %496 = vmatpush.msra.mxu0 0.0
    %497 = vmatpush.msra.mxu0 0.0
    %498 = vmatpush.msra.mxu0 0.0
    %499 = vmatpush.msra.mxu0 0.0
    %500 = vmatpush.msra.mxu0 0.0
    %501 = vmatpush.msra.mxu0 0.0
    %502 = vmatpush.msra.mxu0 0.0
    %503 = vmatpush.msra.mxu0 0.0
    %504 = vmatpush.msra.mxu0 %v427
    %505 = vmatpush.msra.mxu0 %v411
    %506 = vmatpush.msra.mxu0 %v395
    %507 = vmatpush.msra.mxu0 %v379
    %508 = vmatpush.msra.mxu0 %v363
    %509 = vmatpush.msra.mxu0 %v347
    %510 = vmatpush.msra.mxu0 %v331
    %511 = vmatpush.msra.mxu0 %v315
    %512 = vmatmul.f32.gmra.mxu0 %v445
    %v513 = vpop.f32.mrf.mxu0
    %v514 = vadd.f32 0.0, %v513
    %515 = vmatmul.f32.gmra.mxu0 %v448
    %v516 = vpop.f32.mrf.mxu0
    %v517 = vadd.f32 0.0, %v516
    %518 = vdwg.mxu0
    %519 = vmatpush.msra.mxu0 0.0
    %520 = vmatpush.msra.mxu0 0.0
    %521 = vmatpush.msra.mxu0 0.0
    %522 = vmatpush.msra.mxu0 0.0
    %523 = vmatpush.msra.mxu0 0.0
    %524 = vmatpush.msra.mxu0 0.0
    %525 = vmatpush.msra.mxu0 0.0
    %526 = vmatpush.msra.mxu0 0.0
    %527 = vmatpush.msra.mxu0 %v428
    %528 = vmatpush.msra.mxu0 %v412
    %529 = vmatpush.msra.mxu0 %v396
    %530 = vmatpush.msra.mxu0 %v380
    %531 = vmatpush.msra.mxu0 %v364
    %532 = vmatpush.msra.mxu0 %v348
    %533 = vmatpush.msra.mxu0 %v332
    %534 = vmatpush.msra.mxu0 %v316
    %535 = vmatmul.f32.gmra.mxu0 %v445
    %v536 = vpop.f32.mrf.mxu0
    %v537 = vadd.f32 0.0, %v536
    %538 = vmatmul.f32.gmra.mxu0 %v448
    %v539 = vpop.f32.mrf.mxu0
    %v540 = vadd.f32 0.0, %v539
    %541 = vdwg.mxu0
    %542 = vmatpush.msra.mxu0 0.0
    %543 = vmatpush.msra.mxu0 0.0
    %544 = vmatpush.msra.mxu0 0.0
    %545 = vmatpush.msra.mxu0 0.0
    %546 = vmatpush.msra.mxu0 0.0
    %547 = vmatpush.msra.mxu0 0.0
    %548 = vmatpush.msra.mxu0 0.0
    %549 = vmatpush.msra.mxu0 0.0
    %550 = vmatpush.msra.mxu0 %v429
    %551 = vmatpush.msra.mxu0 %v413
    %552 = vmatpush.msra.mxu0 %v397
    %553 = vmatpush.msra.mxu0 %v381
    %554 = vmatpush.msra.mxu0 %v365
    %555 = vmatpush.msra.mxu0 %v349
    %556 = vmatpush.msra.mxu0 %v333
    %557 = vmatpush.msra.mxu0 %v317
    %558 = vmatmul.f32.gmra.mxu0 %v445
    %v559 = vpop.f32.mrf.mxu0
    %v560 = vadd.f32 0.0, %v559
    %561 = vmatmul.f32.gmra.mxu0 %v448
    %v562 = vpop.f32.mrf.mxu0
    %v563 = vadd.f32 0.0, %v562
    %564 = vdwg.mxu0
    %565 = vmatpush.msra.mxu0 0.0
    %566 = vmatpush.msra.mxu0 0.0
    %567 = vmatpush.msra.mxu0 0.0
    %568 = vmatpush.msra.mxu0 0.0
    %569 = vmatpush.msra.mxu0 0.0
    %570 = vmatpush.msra.mxu0 0.0
    %571 = vmatpush.msra.mxu0 0.0
    %572 = vmatpush.msra.mxu0 0.0
    %573 = vmatpush.msra.mxu0 %v430
    %574 = vmatpush.msra.mxu0 %v414
    %575 = vmatpush.msra.mxu0 %v398
    %576 = vmatpush.msra.mxu0 %v382
    %577 = vmatpush.msra.mxu0 %v366
    %578 = vmatpush.msra.mxu0 %v350
    %579 = vmatpush.msra.mxu0 %v334
    %580 = vmatpush.msra.mxu0 %v318
    %581 = vmatmul.f32.gmra.mxu0 %v445
    %v582 = vpop.f32.mrf.mxu0
    %v583 = vadd.f32 0.0, %v582
    %584 = vmatmul.f32.gmra.mxu0 %v448
    %v585 = vpop.f32.mrf.mxu0
    %v586 = vadd.f32 0.0, %v585
    %587 = vdwg.mxu0
    %588 = vmatpush.msra.mxu0 0.0
    %589 = vmatpush.msra.mxu0 0.0
    %590 = vmatpush.msra.mxu0 0.0
    %591 = vmatpush.msra.mxu0 0.0
    %592 = vmatpush.msra.mxu0 0.0
    %593 = vmatpush.msra.mxu0 0.0
    %594 = vmatpush.msra.mxu0 0.0
    %595 = vmatpush.msra.mxu0 0.0
    %596 = vmatpush.msra.mxu0 %v431
    %597 = vmatpush.msra.mxu0 %v415
    %598 = vmatpush.msra.mxu0 %v399
    %599 = vmatpush.msra.mxu0 %v383
    %600 = vmatpush.msra.mxu0 %v367
    %601 = vmatpush.msra.mxu0 %v351
    %602 = vmatpush.msra.mxu0 %v335
    %603 = vmatpush.msra.mxu0 %v319
    %604 = vmatmul.f32.gmra.mxu0 %v445
    %v605 = vpop.f32.mrf.mxu0
    %v606 = vadd.f32 0.0, %v605
    %607 = vmatmul.f32.gmra.mxu0 %v448
    %v608 = vpop.f32.mrf.mxu0
    %v609 = vadd.f32 0.0, %v608
    %610 = vdwg.mxu0
    %611 = vmatpush.msra.mxu0 0.0
    %612 = vmatpush.msra.mxu0 0.0
    %613 = vmatpush.msra.mxu0 0.0
    %614 = vmatpush.msra.mxu0 0.0
    %615 = vmatpush.msra.mxu0 0.0
    %616 = vmatpush.msra.mxu0 0.0
    %617 = vmatpush.msra.mxu0 0.0
    %618 = vmatpush.msra.mxu0 0.0
    %619 = vmatpush.msra.mxu0 %v432
    %620 = vmatpush.msra.mxu0 %v416
    %621 = vmatpush.msra.mxu0 %v400
    %622 = vmatpush.msra.mxu0 %v384
    %623 = vmatpush.msra.mxu0 %v368
    %624 = vmatpush.msra.mxu0 %v352
    %625 = vmatpush.msra.mxu0 %v336
    %626 = vmatpush.msra.mxu0 %v320
    %627 = vmatmul.f32.gmra.mxu0 %v445
    %v628 = vpop.f32.mrf.mxu0
    %v629 = vadd.f32 0.0, %v628
    %630 = vmatmul.f32.gmra.mxu0 %v448
    %v631 = vpop.f32.mrf.mxu0
    %v632 = vadd.f32 0.0, %v631
    %633 = vdwg.mxu0
    %634 = vmatpush.msra.mxu0 0.0
    %635 = vmatpush.msra.mxu0 0.0
    %636 = vmatpush.msra.mxu0 0.0
    %637 = vmatpush.msra.mxu0 0.0
    %638 = vmatpush.msra.mxu0 0.0
    %639 = vmatpush.msra.mxu0 0.0
    %640 = vmatpush.msra.mxu0 0.0
    %641 = vmatpush.msra.mxu0 0.0
    %642 = vmatpush.msra.mxu0 %v433
    %643 = vmatpush.msra.mxu0 %v417
    %644 = vmatpush.msra.mxu0 %v401
    %645 = vmatpush.msra.mxu0 %v385
    %646 = vmatpush.msra.mxu0 %v369
    %647 = vmatpush.msra.mxu0 %v353
    %648 = vmatpush.msra.mxu0 %v337
    %649 = vmatpush.msra.mxu0 %v321
    %650 = vmatmul.f32.gmra.mxu0 %v445
    %v651 = vpop.f32.mrf.mxu0
    %v652 = vadd.f32 0.0, %v651
    %653 = vmatmul.f32.gmra.mxu0 %v448
    %v654 = vpop.f32.mrf.mxu0
    %v655 = vadd.f32 0.0, %v654
    %656 = vdwg.mxu0
    %657 = vmatpush.msra.mxu0 0.0
    %658 = vmatpush.msra.mxu0 0.0
    %659 = vmatpush.msra.mxu0 0.0
    %660 = vmatpush.msra.mxu0 0.0
    %661 = vmatpush.msra.mxu0 0.0
    %662 = vmatpush.msra.mxu0 0.0
    %663 = vmatpush.msra.mxu0 0.0
    %664 = vmatpush.msra.mxu0 0.0
    %665 = vmatpush.msra.mxu0 %v434
    %666 = vmatpush.msra.mxu0 %v418
    %667 = vmatpush.msra.mxu0 %v402
    %668 = vmatpush.msra.mxu0 %v386
    %669 = vmatpush.msra.mxu0 %v370
    %670 = vmatpush.msra.mxu0 %v354
    %671 = vmatpush.msra.mxu0 %v338
    %672 = vmatpush.msra.mxu0 %v322
    %673 = vmatmul.f32.gmra.mxu0 %v445
    %v674 = vpop.f32.mrf.mxu0
    %v675 = vadd.f32 0.0, %v674
    %676 = vmatmul.f32.gmra.mxu0 %v448
    %v677 = vpop.f32.mrf.mxu0
    %v678 = vadd.f32 0.0, %v677
    %679 = vdwg.mxu0
    %680 = vmatpush.msra.mxu0 0.0
    %681 = vmatpush.msra.mxu0 0.0
    %682 = vmatpush.msra.mxu0 0.0
    %683 = vmatpush.msra.mxu0 0.0
    %684 = vmatpush.msra.mxu0 0.0
    %685 = vmatpush.msra.mxu0 0.0
    %686 = vmatpush.msra.mxu0 0.0
    %687 = vmatpush.msra.mxu0 0.0
    %688 = vmatpush.msra.mxu0 %v435
    %689 = vmatpush.msra.mxu0 %v419
    %690 = vmatpush.msra.mxu0 %v403
    %691 = vmatpush.msra.mxu0 %v387
    %692 = vmatpush.msra.mxu0 %v371
    %693 = vmatpush.msra.mxu0 %v355
    %694 = vmatpush.msra.mxu0 %v339
    %695 = vmatpush.msra.mxu0 %v323
    %696 = vmatmul.f32.gmra.mxu0 %v445
    %v697 = vpop.f32.mrf.mxu0
    %v698 = vadd.f32 0.0, %v697
    %699 = vmatmul.f32.gmra.mxu0 %v448
    %v700 = vpop.f32.mrf.mxu0
    %v701 = vadd.f32 0.0, %v700
    %702 = vdwg.mxu0
    %703 = vmatpush.msra.mxu0 0.0
    %704 = vmatpush.msra.mxu0 0.0
    %705 = vmatpush.msra.mxu0 0.0
    %706 = vmatpush.msra.mxu0 0.0
    %707 = vmatpush.msra.mxu0 0.0
    %708 = vmatpush.msra.mxu0 0.0
    %709 = vmatpush.msra.mxu0 0.0
    %710 = vmatpush.msra.mxu0 0.0
    %711 = vmatpush.msra.mxu0 %v436
    %712 = vmatpush.msra.mxu0 %v420
    %713 = vmatpush.msra.mxu0 %v404
    %714 = vmatpush.msra.mxu0 %v388
    %715 = vmatpush.msra.mxu0 %v372
    %716 = vmatpush.msra.mxu0 %v356
    %717 = vmatpush.msra.mxu0 %v340
    %718 = vmatpush.msra.mxu0 %v324
    %719 = vmatmul.f32.gmra.mxu0 %v445
    %v720 = vpop.f32.mrf.mxu0
    %v721 = vadd.f32 0.0, %v720
    %722 = vmatmul.f32.gmra.mxu0 %v448
    %v723 = vpop.f32.mrf.mxu0
    %v724 = vadd.f32 0.0, %v723
    %725 = vdwg.mxu0
    %726 = vmatpush.msra.mxu0 0.0
    %727 = vmatpush.msra.mxu0 0.0
    %728 = vmatpush.msra.mxu0 0.0
    %729 = vmatpush.msra.mxu0 0.0
    %730 = vmatpush.msra.mxu0 0.0
    %731 = vmatpush.msra.mxu0 0.0
    %732 = vmatpush.msra.mxu0 0.0
    %733 = vmatpush.msra.mxu0 0.0
    %734 = vmatpush.msra.mxu0 %v437
    %735 = vmatpush.msra.mxu0 %v421
    %736 = vmatpush.msra.mxu0 %v405
    %737 = vmatpush.msra.mxu0 %v389
    %738 = vmatpush.msra.mxu0 %v373
    %739 = vmatpush.msra.mxu0 %v357
    %740 = vmatpush.msra.mxu0 %v341
    %741 = vmatpush.msra.mxu0 %v325
    %742 = vmatmul.f32.gmra.mxu0 %v445
    %v743 = vpop.f32.mrf.mxu0
    %v744 = vadd.f32 0.0, %v743
    %745 = vmatmul.f32.gmra.mxu0 %v448
    %v746 = vpop.f32.mrf.mxu0
    %v747 = vadd.f32 0.0, %v746
    %748 = vdwg.mxu0
    %749 = vmatpush.msra.mxu0 0.0
    %750 = vmatpush.msra.mxu0 0.0
    %751 = vmatpush.msra.mxu0 0.0
    %752 = vmatpush.msra.mxu0 0.0
    %753 = vmatpush.msra.mxu0 0.0
    %754 = vmatpush.msra.mxu0 0.0
    %755 = vmatpush.msra.mxu0 0.0
    %756 = vmatpush.msra.mxu0 0.0
    %757 = vmatpush.msra.mxu0 %v438
    %758 = vmatpush.msra.mxu0 %v422
    %759 = vmatpush.msra.mxu0 %v406
    %760 = vmatpush.msra.mxu0 %v390
    %761 = vmatpush.msra.mxu0 %v374
    %762 = vmatpush.msra.mxu0 %v358
    %763 = vmatpush.msra.mxu0 %v342
    %764 = vmatpush.msra.mxu0 %v326
    %765 = vmatmul.f32.gmra.mxu0 %v445
    %v766 = vpop.f32.mrf.mxu0
    %v767 = vadd.f32 0.0, %v766
    %768 = vmatmul.f32.gmra.mxu0 %v448
    %v769 = vpop.f32.mrf.mxu0
    %v770 = vadd.f32 0.0, %v769
    %771 = vdwg.mxu0
    %772 = vmatpush.msra.mxu0 0.0
    %773 = vmatpush.msra.mxu0 0.0
    %774 = vmatpush.msra.mxu0 0.0
    %775 = vmatpush.msra.mxu0 0.0
    %776 = vmatpush.msra.mxu0 0.0
    %777 = vmatpush.msra.mxu0 0.0
    %778 = vmatpush.msra.mxu0 0.0
    %779 = vmatpush.msra.mxu0 0.0
    %780 = vmatpush.msra.mxu0 %v439
    %781 = vmatpush.msra.mxu0 %v423
    %782 = vmatpush.msra.mxu0 %v407
    %783 = vmatpush.msra.mxu0 %v391
    %784 = vmatpush.msra.mxu0 %v375
    %785 = vmatpush.msra.mxu0 %v359
    %786 = vmatpush.msra.mxu0 %v343
    %787 = vmatpush.msra.mxu0 %v327
    %788 = vmatmul.f32.gmra.mxu0 %v445
    %v789 = vpop.f32.mrf.mxu0
    %v790 = vadd.f32 0.0, %v789
    %791 = vmatmul.f32.gmra.mxu0 %v448
    %v792 = vpop.f32.mrf.mxu0
    %v793 = vadd.f32 0.0, %v792
    %794 = vdwg.mxu0
    %795 = vmatpush.msra.mxu0 0.0
    %796 = vmatpush.msra.mxu0 0.0
    %797 = vmatpush.msra.mxu0 0.0
    %798 = vmatpush.msra.mxu0 0.0
    %799 = vmatpush.msra.mxu0 0.0
    %800 = vmatpush.msra.mxu0 0.0
    %801 = vmatpush.msra.mxu0 0.0
    %802 = vmatpush.msra.mxu0 0.0
    %803 = vmatpush.msra.mxu0 %v440
    %804 = vmatpush.msra.mxu0 %v424
    %805 = vmatpush.msra.mxu0 %v408
    %806 = vmatpush.msra.mxu0 %v392
    %807 = vmatpush.msra.mxu0 %v376
    %808 = vmatpush.msra.mxu0 %v360
    %809 = vmatpush.msra.mxu0 %v344
    %810 = vmatpush.msra.mxu0 %v328
    %811 = vmatmul.f32.gmra.mxu0 %v445
    %v812 = vpop.f32.mrf.mxu0
    %v813 = vadd.f32 0.0, %v812
    %814 = vmatmul.f32.gmra.mxu0 %v448
    %v815 = vpop.f32.mrf.mxu0
    %v816 = vadd.f32 0.0, %v815
    %817 = vdwg.mxu0
    %v818 = vmul.f32 %v468, %v652
    %v819 = vmul.f32 %v491, %v675
    %v820 = vmul.f32 %v514, %v698
    %v821 = vmul.f32 %v537, %v721
    %v822 = vmul.f32 %v560, %v744
    %v823 = vmul.f32 %v583, %v767
    %v824 = vmul.f32 %v606, %v790
    %v825 = vmul.f32 %v629, %v813
    %v826 = vmul.f32 %v471, %v655
    %v827 = vmul.f32 %v494, %v678
    %v828 = vmul.f32 %v517, %v701
    %v829 = vmul.f32 %v540, %v724
    %v830 = vmul.f32 %v563, %v747
    %v831 = vmul.f32 %v586, %v770
    %v832 = vmul.f32 %v609, %v793
    %v833 = vmul.f32 %v632, %v816
    %v834 = vld [vmem:[%s2] sm:$0xff]
    %v835 = vld [vmem:[%s2 + $0x8] sm:$0xff]
    %v836 = vld [vmem:[%s2 + $0x10] sm:$0xff]
    %v837 = vld [vmem:[%s2 + $0x18] sm:$0xff]
    %v838 = vld [vmem:[%s3] sm:$0xff]
    %v839 = vld [vmem:[%s3 + $0x8] sm:$0xff]
    %v840 = vld [vmem:[%s3 + $0x10] sm:$0xff]
    %v841 = vld [vmem:[%s3 + $0x18] sm:$0xff]
    %843 = vset.pattern.permute.xlu0 0
    %844 = vperm.xlu0 %843, %v838
    %v845 = vpop.permute.xlu0 %844
    %848 = vset.pattern.permute.xlu0 0
    %849 = vperm.xlu0 %848, %v839
    %v850 = vpop.permute.xlu0 %849
    %853 = vset.pattern.permute.xlu0 0
    %854 = vperm.xlu0 %853, %v840
    %v855 = vpop.permute.xlu0 %854
    %858 = vset.pattern.permute.xlu0 0
    %859 = vperm.xlu0 %858, %v841
    %v860 = vpop.permute.xlu0 %859
    %vm862 = vcmask 130048
    %v864 = vsel %vm862, %v834, 0
    %v867 = vsel %vm862, %v835, 0
    %v870 = vsel %vm862, %v836, 0
    %v873 = vsel %vm862, %v837, 0
    %875 = vmatpush.msra.mxu0 0.0
    %876 = vmatpush.msra.mxu0 0.0
    %877 = vmatpush.msra.mxu0 0.0
    %878 = vmatpush.msra.mxu0 0.0
    %879 = vmatpush.msra.mxu0 0.0
    %880 = vmatpush.msra.mxu0 0.0
    %881 = vmatpush.msra.mxu0 0.0
    %882 = vmatpush.msra.mxu0 0.0
    %883 = vmatpush.msra.mxu0 0.0
    %884 = vmatpush.msra.mxu0 0.0
    %885 = vmatpush.msra.mxu0 0.0
    %886 = vmatpush.msra.mxu0 0.0
    %887 = vmatpush.msra.mxu0 0.0
    %888 = vmatpush.msra.mxu0 0.0
    %889 = vmatpush.msra.mxu0 %v826
    %890 = vmatpush.msra.mxu0 %v818
    %891 = vmatmul.f32.gmra.mxu0 %v864
    %v892 = vpop.f32.mrf.mxu0
    %v893 = vadd.f32 %v845, %v892
    %894 = vmatmul.f32.gmra.mxu0 %v867
    %v895 = vpop.f32.mrf.mxu0
    %v896 = vadd.f32 %v850, %v895
    %897 = vmatmul.f32.gmra.mxu0 %v870
    %v898 = vpop.f32.mrf.mxu0
    %v899 = vadd.f32 %v855, %v898
    %900 = vmatmul.f32.gmra.mxu0 %v873
    %v901 = vpop.f32.mrf.mxu0
    %v902 = vadd.f32 %v860, %v901
    %903 = vdwg.mxu0
    %904 = vmatpush.msra.mxu0 0.0
    %905 = vmatpush.msra.mxu0 0.0
    %906 = vmatpush.msra.mxu0 0.0
    %907 = vmatpush.msra.mxu0 0.0
    %908 = vmatpush.msra.mxu0 0.0
    %909 = vmatpush.msra.mxu0 0.0
    %910 = vmatpush.msra.mxu0 0.0
    %911 = vmatpush.msra.mxu0 0.0
    %912 = vmatpush.msra.mxu0 0.0
    %913 = vmatpush.msra.mxu0 0.0
    %914 = vmatpush.msra.mxu0 0.0
    %915 = vmatpush.msra.mxu0 0.0
    %916 = vmatpush.msra.mxu0 0.0
    %917 = vmatpush.msra.mxu0 0.0
    %918 = vmatpush.msra.mxu0 %v827
    %919 = vmatpush.msra.mxu0 %v819
    %920 = vmatmul.f32.gmra.mxu0 %v864
    %v921 = vpop.f32.mrf.mxu0
    %v922 = vadd.f32 %v845, %v921
    %923 = vmatmul.f32.gmra.mxu0 %v867
    %v924 = vpop.f32.mrf.mxu0
    %v925 = vadd.f32 %v850, %v924
    %926 = vmatmul.f32.gmra.mxu0 %v870
    %v927 = vpop.f32.mrf.mxu0
    %v928 = vadd.f32 %v855, %v927
    %929 = vmatmul.f32.gmra.mxu0 %v873
    %v930 = vpop.f32.mrf.mxu0
    %v931 = vadd.f32 %v860, %v930
    %932 = vdwg.mxu0
    %933 = vmatpush.msra.mxu0 0.0
    %934 = vmatpush.msra.mxu0 0.0
    %935 = vmatpush.msra.mxu0 0.0
    %936 = vmatpush.msra.mxu0 0.0
    %937 = vmatpush.msra.mxu0 0.0
    %938 = vmatpush.msra.mxu0 0.0
    %939 = vmatpush.msra.mxu0 0.0
    %940 = vmatpush.msra.mxu0 0.0
    %941 = vmatpush.msra.mxu0 0.0
    %942 = vmatpush.msra.mxu0 0.0
    %943 = vmatpush.msra.mxu0 0.0
    %944 = vmatpush.msra.mxu0 0.0
    %945 = vmatpush.msra.mxu0 0.0
    %946 = vmatpush.msra.mxu0 0.0
    %947 = vmatpush.msra.mxu0 %v828
    %948 = vmatpush.msra.mxu0 %v820
    %949 = vmatmul.f32.gmra.mxu0 %v864
    %v950 = vpop.f32.mrf.mxu0
    %v951 = vadd.f32 %v845, %v950
    %952 = vmatmul.f32.gmra.mxu0 %v867
    %v953 = vpop.f32.mrf.mxu0
    %v954 = vadd.f32 %v850, %v953
    %955 = vmatmul.f32.gmra.mxu0 %v870
    %v956 = vpop.f32.mrf.mxu0
    %v957 = vadd.f32 %v855, %v956
    %958 = vmatmul.f32.gmra.mxu0 %v873
    %v959 = vpop.f32.mrf.mxu0
    %v960 = vadd.f32 %v860, %v959
    %961 = vdwg.mxu0
    %962 = vmatpush.msra.mxu0 0.0
    %963 = vmatpush.msra.mxu0 0.0
    %964 = vmatpush.msra.mxu0 0.0
    %965 = vmatpush.msra.mxu0 0.0
    %966 = vmatpush.msra.mxu0 0.0
    %967 = vmatpush.msra.mxu0 0.0
    %968 = vmatpush.msra.mxu0 0.0
    %969 = vmatpush.msra.mxu0 0.0
    %970 = vmatpush.msra.mxu0 0.0
    %971 = vmatpush.msra.mxu0 0.0
    %972 = vmatpush.msra.mxu0 0.0
    %973 = vmatpush.msra.mxu0 0.0
    %974 = vmatpush.msra.mxu0 0.0
    %975 = vmatpush.msra.mxu0 0.0
    %976 = vmatpush.msra.mxu0 %v829
    %977 = vmatpush.msra.mxu0 %v821
    %978 = vmatmul.f32.gmra.mxu0 %v864
    %v979 = vpop.f32.mrf.mxu0
    %v980 = vadd.f32 %v845, %v979
    %981 = vmatmul.f32.gmra.mxu0 %v867
    %v982 = vpop.f32.mrf.mxu0
    %v983 = vadd.f32 %v850, %v982
    %984 = vmatmul.f32.gmra.mxu0 %v870
    %v985 = vpop.f32.mrf.mxu0
    %v986 = vadd.f32 %v855, %v985
    %987 = vmatmul.f32.gmra.mxu0 %v873
    %v988 = vpop.f32.mrf.mxu0
    %v989 = vadd.f32 %v860, %v988
    %990 = vdwg.mxu0
    %991 = vmatpush.msra.mxu0 0.0
    %992 = vmatpush.msra.mxu0 0.0
    %993 = vmatpush.msra.mxu0 0.0
    %994 = vmatpush.msra.mxu0 0.0
    %995 = vmatpush.msra.mxu0 0.0
    %996 = vmatpush.msra.mxu0 0.0
    %997 = vmatpush.msra.mxu0 0.0
    %998 = vmatpush.msra.mxu0 0.0
    %999 = vmatpush.msra.mxu0 0.0
    %1000 = vmatpush.msra.mxu0 0.0
    %1001 = vmatpush.msra.mxu0 0.0
    %1002 = vmatpush.msra.mxu0 0.0
    %1003 = vmatpush.msra.mxu0 0.0
    %1004 = vmatpush.msra.mxu0 0.0
    %1005 = vmatpush.msra.mxu0 %v830
    %1006 = vmatpush.msra.mxu0 %v822
    %1007 = vmatmul.f32.gmra.mxu0 %v864
    %v1008 = vpop.f32.mrf.mxu0
    %v1009 = vadd.f32 %v845, %v1008
    %1010 = vmatmul.f32.gmra.mxu0 %v867
    %v1011 = vpop.f32.mrf.mxu0
    %v1012 = vadd.f32 %v850, %v1011
    %1013 = vmatmul.f32.gmra.mxu0 %v870
    %v1014 = vpop.f32.mrf.mxu0
    %v1015 = vadd.f32 %v855, %v1014
    %1016 = vmatmul.f32.gmra.mxu0 %v873
    %v1017 = vpop.f32.mrf.mxu0
    %v1018 = vadd.f32 %v860, %v1017
    %1019 = vdwg.mxu0
    %1020 = vmatpush.msra.mxu0 0.0
    %1021 = vmatpush.msra.mxu0 0.0
    %1022 = vmatpush.msra.mxu0 0.0
    %1023 = vmatpush.msra.mxu0 0.0
    %1024 = vmatpush.msra.mxu0 0.0
    %1025 = vmatpush.msra.mxu0 0.0
    %1026 = vmatpush.msra.mxu0 0.0
    %1027 = vmatpush.msra.mxu0 0.0
    %1028 = vmatpush.msra.mxu0 0.0
    %1029 = vmatpush.msra.mxu0 0.0
    %1030 = vmatpush.msra.mxu0 0.0
    %1031 = vmatpush.msra.mxu0 0.0
    %1032 = vmatpush.msra.mxu0 0.0
    %1033 = vmatpush.msra.mxu0 0.0
    %1034 = vmatpush.msra.mxu0 %v831
    %1035 = vmatpush.msra.mxu0 %v823
    %1036 = vmatmul.f32.gmra.mxu0 %v864
    %v1037 = vpop.f32.mrf.mxu0
    %v1038 = vadd.f32 %v845, %v1037
    %1039 = vmatmul.f32.gmra.mxu0 %v867
    %v1040 = vpop.f32.mrf.mxu0
    %v1041 = vadd.f32 %v850, %v1040
    %1042 = vmatmul.f32.gmra.mxu0 %v870
    %v1043 = vpop.f32.mrf.mxu0
    %v1044 = vadd.f32 %v855, %v1043
    %1045 = vmatmul.f32.gmra.mxu0 %v873
    %v1046 = vpop.f32.mrf.mxu0
    %v1047 = vadd.f32 %v860, %v1046
    %1048 = vdwg.mxu0
    %1049 = vmatpush.msra.mxu0 0.0
    %1050 = vmatpush.msra.mxu0 0.0
    %1051 = vmatpush.msra.mxu0 0.0
    %1052 = vmatpush.msra.mxu0 0.0
    %1053 = vmatpush.msra.mxu0 0.0
    %1054 = vmatpush.msra.mxu0 0.0
    %1055 = vmatpush.msra.mxu0 0.0
    %1056 = vmatpush.msra.mxu0 0.0
    %1057 = vmatpush.msra.mxu0 0.0
    %1058 = vmatpush.msra.mxu0 0.0
    %1059 = vmatpush.msra.mxu0 0.0
    %1060 = vmatpush.msra.mxu0 0.0
    %1061 = vmatpush.msra.mxu0 0.0
    %1062 = vmatpush.msra.mxu0 0.0
    %1063 = vmatpush.msra.mxu0 %v832
    %1064 = vmatpush.msra.mxu0 %v824
    %1065 = vmatmul.f32.gmra.mxu0 %v864
    %v1066 = vpop.f32.mrf.mxu0
    %v1067 = vadd.f32 %v845, %v1066
    %1068 = vmatmul.f32.gmra.mxu0 %v867
    %v1069 = vpop.f32.mrf.mxu0
    %v1070 = vadd.f32 %v850, %v1069
    %1071 = vmatmul.f32.gmra.mxu0 %v870
    %v1072 = vpop.f32.mrf.mxu0
    %v1073 = vadd.f32 %v855, %v1072
    %1074 = vmatmul.f32.gmra.mxu0 %v873
    %v1075 = vpop.f32.mrf.mxu0
    %v1076 = vadd.f32 %v860, %v1075
    %1077 = vdwg.mxu0
    %1078 = vmatpush.msra.mxu0 0.0
    %1079 = vmatpush.msra.mxu0 0.0
    %1080 = vmatpush.msra.mxu0 0.0
    %1081 = vmatpush.msra.mxu0 0.0
    %1082 = vmatpush.msra.mxu0 0.0
    %1083 = vmatpush.msra.mxu0 0.0
    %1084 = vmatpush.msra.mxu0 0.0
    %1085 = vmatpush.msra.mxu0 0.0
    %1086 = vmatpush.msra.mxu0 0.0
    %1087 = vmatpush.msra.mxu0 0.0
    %1088 = vmatpush.msra.mxu0 0.0
    %1089 = vmatpush.msra.mxu0 0.0
    %1090 = vmatpush.msra.mxu0 0.0
    %1091 = vmatpush.msra.mxu0 0.0
    %1092 = vmatpush.msra.mxu0 %v833
    %1093 = vmatpush.msra.mxu0 %v825
    %1094 = vmatmul.f32.gmra.mxu0 %v864
    %v1095 = vpop.f32.mrf.mxu0
    %v1096 = vadd.f32 %v845, %v1095
    %1097 = vmatmul.f32.gmra.mxu0 %v867
    %v1098 = vpop.f32.mrf.mxu0
    %v1099 = vadd.f32 %v850, %v1098
    %1100 = vmatmul.f32.gmra.mxu0 %v870
    %v1101 = vpop.f32.mrf.mxu0
    %v1102 = vadd.f32 %v855, %v1101
    %1103 = vmatmul.f32.gmra.mxu0 %v873
    %v1104 = vpop.f32.mrf.mxu0
    %v1105 = vadd.f32 %v860, %v1104
    %1106 = vdwg.mxu0
    %v1107 = vmax.f32 %v893, 0.0
    %v1108 = vmax.f32 %v922, 0.0
    %v1109 = vmax.f32 %v951, 0.0
    %v1110 = vmax.f32 %v980, 0.0
    %v1111 = vmax.f32 %v1009, 0.0
    %v1112 = vmax.f32 %v1038, 0.0
    %v1113 = vmax.f32 %v1067, 0.0
    %v1114 = vmax.f32 %v1096, 0.0
    %v1115 = vmax.f32 %v896, 0.0
    %v1116 = vmax.f32 %v925, 0.0
    %v1117 = vmax.f32 %v954, 0.0
    %v1118 = vmax.f32 %v983, 0.0
    %v1119 = vmax.f32 %v1012, 0.0
    %v1120 = vmax.f32 %v1041, 0.0
    %v1121 = vmax.f32 %v1070, 0.0
    %v1122 = vmax.f32 %v1099, 0.0
    %v1123 = vmax.f32 %v899, 0.0
    %v1124 = vmax.f32 %v928, 0.0
    %v1125 = vmax.f32 %v957, 0.0
    %v1126 = vmax.f32 %v986, 0.0
    %v1127 = vmax.f32 %v1015, 0.0
    %v1128 = vmax.f32 %v1044, 0.0
    %v1129 = vmax.f32 %v1073, 0.0
    %v1130 = vmax.f32 %v1102, 0.0
    %v1131 = vmax.f32 %v902, 0.0
    %v1132 = vmax.f32 %v931, 0.0
    %v1133 = vmax.f32 %v960, 0.0
    %v1134 = vmax.f32 %v989, 0.0
    %v1135 = vmax.f32 %v1018, 0.0
    %v1136 = vmax.f32 %v1047, 0.0
    %v1137 = vmax.f32 %v1076, 0.0
    %v1138 = vmax.f32 %v1105, 0.0
    %v1139 = vld [vmem:[%s4] sm:$0xff]
    %v1140 = vld [vmem:[%s4 + $0x8] sm:$0xff]
    %v1141 = vld [vmem:[%s4 + $0x10] sm:$0xff]
    %v1142 = vld [vmem:[%s4 + $0x18] sm:$0xff]
    %v1143 = vld [vmem:[%s5] sm:$0xff]
    %v1144 = vld [vmem:[%s5 + $0x8] sm:$0xff]
    %v1145 = vld [vmem:[%s5 + $0x10] sm:$0xff]
    %v1146 = vld [vmem:[%s5 + $0x18] sm:$0xff]
    %1148 = vset.pattern.permute.xlu0 0
    %1149 = vperm.xlu0 %1148, %v1143
    %v1150 = vpop.permute.xlu0 %1149
    %1153 = vset.pattern.permute.xlu0 0
    %1154 = vperm.xlu0 %1153, %v1144
    %v1155 = vpop.permute.xlu0 %1154
    %1158 = vset.pattern.permute.xlu0 0
    %1159 = vperm.xlu0 %1158, %v1145
    %v1160 = vpop.permute.xlu0 %1159
    %1163 = vset.pattern.permute.xlu0 0
    %1164 = vperm.xlu0 %1163, %v1146
    %v1165 = vpop.permute.xlu0 %1164
    %vm1167 = vcmask 261120
    %v1169 = vsel %vm1167, %v1139, 0
    %v1172 = vsel %vm1167, %v1140, 0
    %v1175 = vsel %vm1167, %v1141, 0
    %v1178 = vsel %vm1167, %v1142, 0
    %1180 = vmatpush.msra.mxu0 0.0
    %1181 = vmatpush.msra.mxu0 0.0
    %1182 = vmatpush.msra.mxu0 0.0
    %1183 = vmatpush.msra.mxu0 0.0
    %1184 = vmatpush.msra.mxu0 0.0
    %1185 = vmatpush.msra.mxu0 0.0
    %1186 = vmatpush.msra.mxu0 0.0
    %1187 = vmatpush.msra.mxu0 0.0
    %1188 = vmatpush.msra.mxu0 0.0
    %1189 = vmatpush.msra.mxu0 0.0
    %1190 = vmatpush.msra.mxu0 0.0
    %1191 = vmatpush.msra.mxu0 0.0
    %1192 = vmatpush.msra.mxu0 %v1131
    %1193 = vmatpush.msra.mxu0 %v1123
    %1194 = vmatpush.msra.mxu0 %v1115
    %1195 = vmatpush.msra.mxu0 %v1107
    %1196 = vmatmul.f32.gmra.mxu0 %v1169
    %v1197 = vpop.f32.mrf.mxu0
    %v1198 = vadd.f32 %v1150, %v1197
    %1199 = vmatmul.f32.gmra.mxu0 %v1172
    %v1200 = vpop.f32.mrf.mxu0
    %v1201 = vadd.f32 %v1155, %v1200
    %1202 = vmatmul.f32.gmra.mxu0 %v1175
    %v1203 = vpop.f32.mrf.mxu0
    %v1204 = vadd.f32 %v1160, %v1203
    %1205 = vmatmul.f32.gmra.mxu0 %v1178
    %v1206 = vpop.f32.mrf.mxu0
    %v1207 = vadd.f32 %v1165, %v1206
    %1208 = vdwg.mxu0
    %1209 = vmatpush.msra.mxu0 0.0
    %1210 = vmatpush.msra.mxu0 0.0
    %1211 = vmatpush.msra.mxu0 0.0
    %1212 = vmatpush.msra.mxu0 0.0
    %1213 = vmatpush.msra.mxu0 0.0
    %1214 = vmatpush.msra.mxu0 0.0
    %1215 = vmatpush.msra.mxu0 0.0
    %1216 = vmatpush.msra.mxu0 0.0
    %1217 = vmatpush.msra.mxu0 0.0
    %1218 = vmatpush.msra.mxu0 0.0
    %1219 = vmatpush.msra.mxu0 0.0
    %1220 = vmatpush.msra.mxu0 0.0
    %1221 = vmatpush.msra.mxu0 %v1132
    %1222 = vmatpush.msra.mxu0 %v1124
    %1223 = vmatpush.msra.mxu0 %v1116
    %1224 = vmatpush.msra.mxu0 %v1108
    %1225 = vmatmul.f32.gmra.mxu0 %v1169
    %v1226 = vpop.f32.mrf.mxu0
    %v1227 = vadd.f32 %v1150, %v1226
    %1228 = vmatmul.f32.gmra.mxu0 %v1172
    %v1229 = vpop.f32.mrf.mxu0
    %v1230 = vadd.f32 %v1155, %v1229
    %1231 = vmatmul.f32.gmra.mxu0 %v1175
    %v1232 = vpop.f32.mrf.mxu0
    %v1233 = vadd.f32 %v1160, %v1232
    %1234 = vmatmul.f32.gmra.mxu0 %v1178
    %v1235 = vpop.f32.mrf.mxu0
    %v1236 = vadd.f32 %v1165, %v1235
    %1237 = vdwg.mxu0
    %1238 = vmatpush.msra.mxu0 0.0
    %1239 = vmatpush.msra.mxu0 0.0
    %1240 = vmatpush.msra.mxu0 0.0
    %1241 = vmatpush.msra.mxu0 0.0
    %1242 = vmatpush.msra.mxu0 0.0
    %1243 = vmatpush.msra.mxu0 0.0
    %1244 = vmatpush.msra.mxu0 0.0
    %1245 = vmatpush.msra.mxu0 0.0
    %1246 = vmatpush.msra.mxu0 0.0
    %1247 = vmatpush.msra.mxu0 0.0
    %1248 = vmatpush.msra.mxu0 0.0
    %1249 = vmatpush.msra.mxu0 0.0
    %1250 = vmatpush.msra.mxu0 %v1133
    %1251 = vmatpush.msra.mxu0 %v1125
    %1252 = vmatpush.msra.mxu0 %v1117
    %1253 = vmatpush.msra.mxu0 %v1109
    %1254 = vmatmul.f32.gmra.mxu0 %v1169
    %v1255 = vpop.f32.mrf.mxu0
    %v1256 = vadd.f32 %v1150, %v1255
    %1257 = vmatmul.f32.gmra.mxu0 %v1172
    %v1258 = vpop.f32.mrf.mxu0
    %v1259 = vadd.f32 %v1155, %v1258
    %1260 = vmatmul.f32.gmra.mxu0 %v1175
    %v1261 = vpop.f32.mrf.mxu0
    %v1262 = vadd.f32 %v1160, %v1261
    %1263 = vmatmul.f32.gmra.mxu0 %v1178
    %v1264 = vpop.f32.mrf.mxu0
    %v1265 = vadd.f32 %v1165, %v1264
    %1266 = vdwg.mxu0
    %1267 = vmatpush.msra.mxu0 0.0
    %1268 = vmatpush.msra.mxu0 0.0
    %1269 = vmatpush.msra.mxu0 0.0
    %1270 = vmatpush.msra.mxu0 0.0
    %1271 = vmatpush.msra.mxu0 0.0
    %1272 = vmatpush.msra.mxu0 0.0
    %1273 = vmatpush.msra.mxu0 0.0
    %1274 = vmatpush.msra.mxu0 0.0
    %1275 = vmatpush.msra.mxu0 0.0
    %1276 = vmatpush.msra.mxu0 0.0
    %1277 = vmatpush.msra.mxu0 0.0
    %1278 = vmatpush.msra.mxu0 0.0
    %1279 = vmatpush.msra.mxu0 %v1134
    %1280 = vmatpush.msra.mxu0 %v1126
    %1281 = vmatpush.msra.mxu0 %v1118
    %1282 = vmatpush.msra.mxu0 %v1110
    %1283 = vmatmul.f32.gmra.mxu0 %v1169
    %v1284 = vpop.f32.mrf.mxu0
    %v1285 = vadd.f32 %v1150, %v1284
    %1286 = vmatmul.f32.gmra.mxu0 %v1172
    %v1287 = vpop.f32.mrf.mxu0
    %v1288 = vadd.f32 %v1155, %v1287
    %1289 = vmatmul.f32.gmra.mxu0 %v1175
    %v1290 = vpop.f32.mrf.mxu0
    %v1291 = vadd.f32 %v1160, %v1290
    %1292 = vmatmul.f32.gmra.mxu0 %v1178
    %v1293 = vpop.f32.mrf.mxu0
    %v1294 = vadd.f32 %v1165, %v1293
    %1295 = vdwg.mxu0
    %1296 = vmatpush.msra.mxu0 0.0
    %1297 = vmatpush.msra.mxu0 0.0
    %1298 = vmatpush.msra.mxu0 0.0
    %1299 = vmatpush.msra.mxu0 0.0
    %1300 = vmatpush.msra.mxu0 0.0
    %1301 = vmatpush.msra.mxu0 0.0
    %1302 = vmatpush.msra.mxu0 0.0
    %1303 = vmatpush.msra.mxu0 0.0
    %1304 = vmatpush.msra.mxu0 0.0
    %1305 = vmatpush.msra.mxu0 0.0
    %1306 = vmatpush.msra.mxu0 0.0
    %1307 = vmatpush.msra.mxu0 0.0
    %1308 = vmatpush.msra.mxu0 %v1135
    %1309 = vmatpush.msra.mxu0 %v1127
    %1310 = vmatpush.msra.mxu0 %v1119
    %1311 = vmatpush.msra.mxu0 %v1111
    %1312 = vmatmul.f32.gmra.mxu0 %v1169
    %v1313 = vpop.f32.mrf.mxu0
    %v1314 = vadd.f32 %v1150, %v1313
    %1315 = vmatmul.f32.gmra.mxu0 %v1172
    %v1316 = vpop.f32.mrf.mxu0
    %v1317 = vadd.f32 %v1155, %v1316
    %1318 = vmatmul.f32.gmra.mxu0 %v1175
    %v1319 = vpop.f32.mrf.mxu0
    %v1320 = vadd.f32 %v1160, %v1319
    %1321 = vmatmul.f32.gmra.mxu0 %v1178
    %v1322 = vpop.f32.mrf.mxu0
    %v1323 = vadd.f32 %v1165, %v1322
    %1324 = vdwg.mxu0
    %1325 = vmatpush.msra.mxu0 0.0
    %1326 = vmatpush.msra.mxu0 0.0
    %1327 = vmatpush.msra.mxu0 0.0
    %1328 = vmatpush.msra.mxu0 0.0
    %1329 = vmatpush.msra.mxu0 0.0
    %1330 = vmatpush.msra.mxu0 0.0
    %1331 = vmatpush.msra.mxu0 0.0
    %1332 = vmatpush.msra.mxu0 0.0
    %1333 = vmatpush.msra.mxu0 0.0
    %1334 = vmatpush.msra.mxu0 0.0
    %1335 = vmatpush.msra.mxu0 0.0
    %1336 = vmatpush.msra.mxu0 0.0
    %1337 = vmatpush.msra.mxu0 %v1136
    %1338 = vmatpush.msra.mxu0 %v1128
    %1339 = vmatpush.msra.mxu0 %v1120
    %1340 = vmatpush.msra.mxu0 %v1112
    %1341 = vmatmul.f32.gmra.mxu0 %v1169
    %v1342 = vpop.f32.mrf.mxu0
    %v1343 = vadd.f32 %v1150, %v1342
    %1344 = vmatmul.f32.gmra.mxu0 %v1172
    %v1345 = vpop.f32.mrf.mxu0
    %v1346 = vadd.f32 %v1155, %v1345
    %1347 = vmatmul.f32.gmra.mxu0 %v1175
    %v1348 = vpop.f32.mrf.mxu0
    %v1349 = vadd.f32 %v1160, %v1348
    %1350 = vmatmul.f32.gmra.mxu0 %v1178
    %v1351 = vpop.f32.mrf.mxu0
    %v1352 = vadd.f32 %v1165, %v1351
    %1353 = vdwg.mxu0
    %1354 = vmatpush.msra.mxu0 0.0
    %1355 = vmatpush.msra.mxu0 0.0
    %1356 = vmatpush.msra.mxu0 0.0
    %1357 = vmatpush.msra.mxu0 0.0
    %1358 = vmatpush.msra.mxu0 0.0
    %1359 = vmatpush.msra.mxu0 0.0
    %1360 = vmatpush.msra.mxu0 0.0
    %1361 = vmatpush.msra.mxu0 0.0
    %1362 = vmatpush.msra.mxu0 0.0
    %1363 = vmatpush.msra.mxu0 0.0
    %1364 = vmatpush.msra.mxu0 0.0
    %1365 = vmatpush.msra.mxu0 0.0
    %1366 = vmatpush.msra.mxu0 %v1137
    %1367 = vmatpush.msra.mxu0 %v1129
    %1368 = vmatpush.msra.mxu0 %v1121
    %1369 = vmatpush.msra.mxu0 %v1113
    %1370 = vmatmul.f32.gmra.mxu0 %v1169
    %v1371 = vpop.f32.mrf.mxu0
    %v1372 = vadd.f32 %v1150, %v1371
    %1373 = vmatmul.f32.gmra.mxu0 %v1172
    %v1374 = vpop.f32.mrf.mxu0
    %v1375 = vadd.f32 %v1155, %v1374
    %1376 = vmatmul.f32.gmra.mxu0 %v1175
    %v1377 = vpop.f32.mrf.mxu0
    %v1378 = vadd.f32 %v1160, %v1377
    %1379 = vmatmul.f32.gmra.mxu0 %v1178
    %v1380 = vpop.f32.mrf.mxu0
    %v1381 = vadd.f32 %v1165, %v1380
    %1382 = vdwg.mxu0
    %1383 = vmatpush.msra.mxu0 0.0
    %1384 = vmatpush.msra.mxu0 0.0
    %1385 = vmatpush.msra.mxu0 0.0
    %1386 = vmatpush.msra.mxu0 0.0
    %1387 = vmatpush.msra.mxu0 0.0
    %1388 = vmatpush.msra.mxu0 0.0
    %1389 = vmatpush.msra.mxu0 0.0
    %1390 = vmatpush.msra.mxu0 0.0
    %1391 = vmatpush.msra.mxu0 0.0
    %1392 = vmatpush.msra.mxu0 0.0
    %1393 = vmatpush.msra.mxu0 0.0
    %1394 = vmatpush.msra.mxu0 0.0
    %1395 = vmatpush.msra.mxu0 %v1138
    %1396 = vmatpush.msra.mxu0 %v1130
    %1397 = vmatpush.msra.mxu0 %v1122
    %1398 = vmatpush.msra.mxu0 %v1114
    %1399 = vmatmul.f32.gmra.mxu0 %v1169
    %v1400 = vpop.f32.mrf.mxu0
    %v1401 = vadd.f32 %v1150, %v1400
    %1402 = vmatmul.f32.gmra.mxu0 %v1172
    %v1403 = vpop.f32.mrf.mxu0
    %v1404 = vadd.f32 %v1155, %v1403
    %1405 = vmatmul.f32.gmra.mxu0 %v1175
    %v1406 = vpop.f32.mrf.mxu0
    %v1407 = vadd.f32 %v1160, %v1406
    %1408 = vmatmul.f32.gmra.mxu0 %v1178
    %v1409 = vpop.f32.mrf.mxu0
    %v1410 = vadd.f32 %v1165, %v1409
    %1411 = vdwg.mxu0
    %v1412 = vmax.f32 %v1198, 0.0
    %v1413 = vmax.f32 %v1227, 0.0
    %v1414 = vmax.f32 %v1256, 0.0
    %v1415 = vmax.f32 %v1285, 0.0
    %v1416 = vmax.f32 %v1314, 0.0
    %v1417 = vmax.f32 %v1343, 0.0
    %v1418 = vmax.f32 %v1372, 0.0
    %v1419 = vmax.f32 %v1401, 0.0
    %v1420 = vmax.f32 %v1201, 0.0
    %v1421 = vmax.f32 %v1230, 0.0
    %v1422 = vmax.f32 %v1259, 0.0
    %v1423 = vmax.f32 %v1288, 0.0
    %v1424 = vmax.f32 %v1317, 0.0
    %v1425 = vmax.f32 %v1346, 0.0
    %v1426 = vmax.f32 %v1375, 0.0
    %v1427 = vmax.f32 %v1404, 0.0
    %v1428 = vmax.f32 %v1204, 0.0
    %v1429 = vmax.f32 %v1233, 0.0
    %v1430 = vmax.f32 %v1262, 0.0
    %v1431 = vmax.f32 %v1291, 0.0
    %v1432 = vmax.f32 %v1320, 0.0
    %v1433 = vmax.f32 %v1349, 0.0
    %v1434 = vmax.f32 %v1378, 0.0
    %v1435 = vmax.f32 %v1407, 0.0
    %v1436 = vmax.f32 %v1207, 0.0
    %v1437 = vmax.f32 %v1236, 0.0
    %v1438 = vmax.f32 %v1265, 0.0
    %v1439 = vmax.f32 %v1294, 0.0
    %v1440 = vmax.f32 %v1323, 0.0
    %v1441 = vmax.f32 %v1352, 0.0
    %v1442 = vmax.f32 %v1381, 0.0
    %v1443 = vmax.f32 %v1410, 0.0
    %v1444 = vld [vmem:[%s6] sm:$0xff]
    %v1445 = vld [vmem:[%s7] sm:$0xff]
    %1447 = vset.pattern.permute.xlu0 0
    %1448 = vperm.xlu0 %1447, %v1445
    %v1449 = vpop.permute.xlu0 %1448
    %v1452 = vsel %vm1167, %v1444, 0
    %1454 = vmatpush.msra.mxu0 0.0
    %1455 = vmatpush.msra.mxu0 0.0
    %1456 = vmatpush.msra.mxu0 0.0
    %1457 = vmatpush.msra.mxu0 0.0
    %1458 = vmatpush.msra.mxu0 0.0
    %1459 = vmatpush.msra.mxu0 0.0
    %1460 = vmatpush.msra.mxu0 0.0
    %1461 = vmatpush.msra.mxu0 0.0
    %1462 = vmatpush.msra.mxu0 0.0
    %1463 = vmatpush.msra.mxu0 0.0
    %1464 = vmatpush.msra.mxu0 0.0
    %1465 = vmatpush.msra.mxu0 0.0
    %1466 = vmatpush.msra.mxu0 %v1436
    %1467 = vmatpush.msra.mxu0 %v1428
    %1468 = vmatpush.msra.mxu0 %v1420
    %1469 = vmatpush.msra.mxu0 %v1412
    %1470 = vmatmul.f32.gmra.mxu0 %v1452
    %v1471 = vpop.f32.mrf.mxu0
    %v1472 = vadd.f32 %v1449, %v1471
    %1473 = vdwg.mxu0
    %1474 = vmatpush.msra.mxu0 0.0
    %1475 = vmatpush.msra.mxu0 0.0
    %1476 = vmatpush.msra.mxu0 0.0
    %1477 = vmatpush.msra.mxu0 0.0
    %1478 = vmatpush.msra.mxu0 0.0
    %1479 = vmatpush.msra.mxu0 0.0
    %1480 = vmatpush.msra.mxu0 0.0
    %1481 = vmatpush.msra.mxu0 0.0
    %1482 = vmatpush.msra.mxu0 0.0
    %1483 = vmatpush.msra.mxu0 0.0
    %1484 = vmatpush.msra.mxu0 0.0
    %1485 = vmatpush.msra.mxu0 0.0
    %1486 = vmatpush.msra.mxu0 %v1437
    %1487 = vmatpush.msra.mxu0 %v1429
    %1488 = vmatpush.msra.mxu0 %v1421
    %1489 = vmatpush.msra.mxu0 %v1413
    %1490 = vmatmul.f32.gmra.mxu0 %v1452
    %v1491 = vpop.f32.mrf.mxu0
    %v1492 = vadd.f32 %v1449, %v1491
    %1493 = vdwg.mxu0
    %1494 = vmatpush.msra.mxu0 0.0
    %1495 = vmatpush.msra.mxu0 0.0
    %1496 = vmatpush.msra.mxu0 0.0
    %1497 = vmatpush.msra.mxu0 0.0
    %1498 = vmatpush.msra.mxu0 0.0
    %1499 = vmatpush.msra.mxu0 0.0
    %1500 = vmatpush.msra.mxu0 0.0
    %1501 = vmatpush.msra.mxu0 0.0
    %1502 = vmatpush.msra.mxu0 0.0
    %1503 = vmatpush.msra.mxu0 0.0
    %1504 = vmatpush.msra.mxu0 0.0
    %1505 = vmatpush.msra.mxu0 0.0
    %1506 = vmatpush.msra.mxu0 %v1438
    %1507 = vmatpush.msra.mxu0 %v1430
    %1508 = vmatpush.msra.mxu0 %v1422
    %1509 = vmatpush.msra.mxu0 %v1414
    %1510 = vmatmul.f32.gmra.mxu0 %v1452
    %v1511 = vpop.f32.mrf.mxu0
    %v1512 = vadd.f32 %v1449, %v1511
    %1513 = vdwg.mxu0
    %1514 = vmatpush.msra.mxu0 0.0
    %1515 = vmatpush.msra.mxu0 0.0
    %1516 = vmatpush.msra.mxu0 0.0
    %1517 = vmatpush.msra.mxu0 0.0
    %1518 = vmatpush.msra.mxu0 0.0
    %1519 = vmatpush.msra.mxu0 0.0
    %1520 = vmatpush.msra.mxu0 0.0
    %1521 = vmatpush.msra.mxu0 0.0
    %1522 = vmatpush.msra.mxu0 0.0
    %1523 = vmatpush.msra.mxu0 0.0
    %1524 = vmatpush.msra.mxu0 0.0
    %1525 = vmatpush.msra.mxu0 0.0
    %1526 = vmatpush.msra.mxu0 %v1439
    %1527 = vmatpush.msra.mxu0 %v1431
    %1528 = vmatpush.msra.mxu0 %v1423
    %1529 = vmatpush.msra.mxu0 %v1415
    %1530 = vmatmul.f32.gmra.mxu0 %v1452
    %v1531 = vpop.f32.mrf.mxu0
    %v1532 = vadd.f32 %v1449, %v1531
    %1533 = vdwg.mxu0
    %1534 = vmatpush.msra.mxu0 0.0
    %1535 = vmatpush.msra.mxu0 0.0
    %1536 = vmatpush.msra.mxu0 0.0
    %1537 = vmatpush.msra.mxu0 0.0
    %1538 = vmatpush.msra.mxu0 0.0
    %1539 = vmatpush.msra.mxu0 0.0
    %1540 = vmatpush.msra.mxu0 0.0
    %1541 = vmatpush.msra.mxu0 0.0
    %1542 = vmatpush.msra.mxu0 0.0
    %1543 = vmatpush.msra.mxu0 0.0
    %1544 = vmatpush.msra.mxu0 0.0
    %1545 = vmatpush.msra.mxu0 0.0
    %1546 = vmatpush.msra.mxu0 %v1440
    %1547 = vmatpush.msra.mxu0 %v1432
    %1548 = vmatpush.msra.mxu0 %v1424
    %1549 = vmatpush.msra.mxu0 %v1416
    %1550 = vmatmul.f32.gmra.mxu0 %v1452
    %v1551 = vpop.f32.mrf.mxu0
    %v1552 = vadd.f32 %v1449, %v1551
    %1553 = vdwg.mxu0
    %1554 = vmatpush.msra.mxu0 0.0
    %1555 = vmatpush.msra.mxu0 0.0
    %1556 = vmatpush.msra.mxu0 0.0
    %1557 = vmatpush.msra.mxu0 0.0
    %1558 = vmatpush.msra.mxu0 0.0
    %1559 = vmatpush.msra.mxu0 0.0
    %1560 = vmatpush.msra.mxu0 0.0
    %1561 = vmatpush.msra.mxu0 0.0
    %1562 = vmatpush.msra.mxu0 0.0
    %1563 = vmatpush.msra.mxu0 0.0
    %1564 = vmatpush.msra.mxu0 0.0
    %1565 = vmatpush.msra.mxu0 0.0
    %1566 = vmatpush.msra.mxu0 %v1441
    %1567 = vmatpush.msra.mxu0 %v1433
    %1568 = vmatpush.msra.mxu0 %v1425
    %1569 = vmatpush.msra.mxu0 %v1417
    %1570 = vmatmul.f32.gmra.mxu0 %v1452
    %v1571 = vpop.f32.mrf.mxu0
    %v1572 = vadd.f32 %v1449, %v1571
    %1573 = vdwg.mxu0
    %1574 = vmatpush.msra.mxu0 0.0
    %1575 = vmatpush.msra.mxu0 0.0
    %1576 = vmatpush.msra.mxu0 0.0
    %1577 = vmatpush.msra.mxu0 0.0
    %1578 = vmatpush.msra.mxu0 0.0
    %1579 = vmatpush.msra.mxu0 0.0
    %1580 = vmatpush.msra.mxu0 0.0
    %1581 = vmatpush.msra.mxu0 0.0
    %1582 = vmatpush.msra.mxu0 0.0
    %1583 = vmatpush.msra.mxu0 0.0
    %1584 = vmatpush.msra.mxu0 0.0
    %1585 = vmatpush.msra.mxu0 0.0
    %1586 = vmatpush.msra.mxu0 %v1442
    %1587 = vmatpush.msra.mxu0 %v1434
    %1588 = vmatpush.msra.mxu0 %v1426
    %1589 = vmatpush.msra.mxu0 %v1418
    %1590 = vmatmul.f32.gmra.mxu0 %v1452
    %v1591 = vpop.f32.mrf.mxu0
    %v1592 = vadd.f32 %v1449, %v1591
    %1593 = vdwg.mxu0
    %1594 = vmatpush.msra.mxu0 0.0
    %1595 = vmatpush.msra.mxu0 0.0
    %1596 = vmatpush.msra.mxu0 0.0
    %1597 = vmatpush.msra.mxu0 0.0
    %1598 = vmatpush.msra.mxu0 0.0
    %1599 = vmatpush.msra.mxu0 0.0
    %1600 = vmatpush.msra.mxu0 0.0
    %1601 = vmatpush.msra.mxu0 0.0
    %1602 = vmatpush.msra.mxu0 0.0
    %1603 = vmatpush.msra.mxu0 0.0
    %1604 = vmatpush.msra.mxu0 0.0
    %1605 = vmatpush.msra.mxu0 0.0
    %1606 = vmatpush.msra.mxu0 %v1443
    %1607 = vmatpush.msra.mxu0 %v1435
    %1608 = vmatpush.msra.mxu0 %v1427
    %1609 = vmatpush.msra.mxu0 %v1419
    %1610 = vmatmul.f32.gmra.mxu0 %v1452
    %v1611 = vpop.f32.mrf.mxu0
    %v1612 = vadd.f32 %v1449, %v1611
    %1613 = vdwg.mxu0
    %1614 = vst [vmem:[#allocation2] sm:$0xff] %v1472
    %1615 = vst [vmem:[#allocation2 + $0x8] sm:$0xff] %v1492
    %1616 = vst [vmem:[#allocation2 + $0x10] sm:$0xff] %v1512
    %1617 = vst [vmem:[#allocation2 + $0x18] sm:$0xff] %v1532
    %1618 = vst [vmem:[#allocation2 + $0x20] sm:$0xff] %v1552
    %1619 = vst [vmem:[#allocation2 + $0x28] sm:$0xff] %v1572
    %1620 = vst [vmem:[#allocation2 + $0x30] sm:$0xff] %v1592
    %1621 = vst [vmem:[#allocation2 + $0x38] sm:$0xff] %v1612
    // Predicated region
    $region34: #{tpu_custom_call.1} parent=1 // pred_check
      _
    $region35: #{tpu_custom_call.1} parent=1 // pred_check_branch
      %1623 = sbr.rel (0) target = $region37
    $region36: #{tpu_custom_call.1} parent=1 // pred_region
      %1625 = vsyncadd [#allocation3], 0
      %s1627 = sshll.u32 [#allocation2], 4
      %s1628 = int_to_ptr.vmem [resolvable:$true] %s1627
      %s1629 = sshll.u32 %s8, 4
      %s1630 = int_to_ptr.hbm [resolvable:$true] %s1629
      %1632 = dma.vmem_to_hbm [thread:$0]  %s1628, 1024, %s1630, [#allocation3]
    $region37: #{tpu_custom_call.1} parent=1 // pred_fallthru
      _
    // Predicated region
    $region38: #{tpu_custom_call.1} parent=1 // pred_check
      _
    $region39: #{tpu_custom_call.1} parent=1 // pred_check_branch
      %1634 = sbr.rel (0) target = $region41
    $region40: #{tpu_custom_call.1} parent=1 // pred_region
      %1636 = dma.done [#allocation3], 1024
    $region41: #{tpu_custom_call.1} parent=1 // pred_fallthru
      _
    %1637 = vsyncpa [#allocation3], 1

</llo_original>
